<compile_context>
chip_gen: v6e
topology: v6e:2x2x1
jax: 0.10.0
libtpu: 0.0.40
codegen_flags: <defaults>
</compile_context>

<pallas_src>
import math

import jax
import jax.numpy as jnp
from jax import lax
from jax.experimental import pallas as pl
from jax.experimental.pallas import tpu as pltpu

# ----------------------- static module / demo configuration -------------------
B = 2            # batch
N_NODES = 4      # num_nodes
N_TRAIN = 4      # len(train_idx) (train_idx = arange(N_TRAIN))
T = 8            # time steps
F_IN = 7         # in_dim (time_mode='none')
D = 32           # hid_dim
HEADS = 4
DH = D // HEADS
LAYERS = 2       # trans_layers
FF = 4 * D       # dim_feedforward
HORIZON = 12
ALPHA = 0.2      # LeakyReLU slope
EPS = 1e-5       # LayerNorm eps (PyTorch default)
NEG = -1e30

NT = N_NODES * T         # 32: (node, time) rows per batch after the GCN
NT_TR = N_TRAIN * T      # 32: (train-node, time) rows per batch before the GCN
HM = HEADS * NT          # 128: head-stacked key rows (fused attention)
OUTW = 128               # lane-dense output width (HORIZON zero-padded)

W_A = 3 * D + D + 2 * FF   # 384 lanes of per-layer transformer weights
W_M = 4 * D + OUTW         # 256 lanes of misc weights [fc1|fc2|gcn|agg|out]

# f32 constants slab row layout
ROW_PE = 0                 # 32 rows x 32 lanes : positional encoding, tiled
ROW_BIAS = 32              # fc1_b / fc2_b / gcn_b (32 lanes), out_b (128 lanes)
ROW_SEL = 40               # 4 rows x 32 lanes : one-hot last-timestep selector
ROW_TV = 48                # 16 rows x 128     : per-layer biases / LN params
ROW_MFULL = 64             # 32 rows x 128     : seq mask (all queries), x HEADS
ROW_MLAST = 96             # 4 rows x 128      : seq mask (last-step queries)
ROW_HM = 104               # 128 rows x 32     : head-block 0/1 mask
R_CONST = ROW_HM + HM      # 232


# ------------------------------ in-kernel helpers ------------------------------

def _lrelu(v):
    return jnp.where(v >= 0.0, v, ALPHA * v)


def _layernorm(v, g, b):
    mu = jnp.mean(v, axis=-1, keepdims=True)
    var = jnp.mean(jnp.square(v - mu), axis=-1, keepdims=True)
    return (v - mu) * lax.rsqrt(var + EPS) * g + b


def _gelu_tanh(v):
    # tanh-GELU on the EUP; |err| vs erf-GELU < ~1e-3, inside tolerance.
    c = math.sqrt(2.0 / math.pi)
    return 0.5 * v * (1.0 + jnp.tanh(c * (v + 0.044715 * (v * v * v))))


def _mmb(a, w_bf16):
    # bf16 operands, f32 accumulate (single-pass on the MXU).
    return jnp.dot(a.astype(jnp.bfloat16), w_bf16,
                   preferred_element_type=jnp.float32)


# ----------------------------------- kernel ------------------------------------

def ggtn_kernel(x_ref, wbig_ref, wmisc_ref, cst_ref, out_ref):
    f32 = jnp.float32
    bf16 = jnp.bfloat16

    wm = wmisc_ref[...]                                   # (D, 256) bf16
    fc1_w, fc2_w = wm[:, 0:D], wm[:, D:2 * D]
    gcn_w, agg = wm[:, 2 * D:3 * D], wm[:, 3 * D:4 * D]
    out_w = wm[:, 4 * D:4 * D + OUTW]

    fc1_b = cst_ref[ROW_BIAS + 0:ROW_BIAS + 1, 0:D]
    fc2_b = cst_ref[ROW_BIAS + 1:ROW_BIAS + 2, 0:D]
    gcn_b = cst_ref[ROW_BIAS + 2:ROW_BIAS + 3, 0:D]
    out_b = cst_ref[ROW_BIAS + 3:ROW_BIAS + 4, 0:OUTW]

    # ---- stage A: per-node feature embedding lrelu(fc2(lrelu(fc1(x)))) -------
    h = _lrelu(jnp.dot(x_ref[...], fc1_w, preferred_element_type=f32) + fc1_b)
    h = _lrelu(_mmb(h, fc2_w) + fc2_b)                    # (NT_TR, D)

    # ---- stage B: 1-hop spatial aggregation (adj (x) I_T) + GCN linear -------
    xg = jnp.dot(agg, h.astype(bf16), preferred_element_type=f32)   # (NT, D)
    xg = _lrelu(_mmb(xg, gcn_w) + gcn_b)

    # ---- stage C: temporal transformer (post-norm, GELU, eval), flat 2-D -----
    x2d = xg + cst_ref[ROW_PE:ROW_PE + NT, 0:D]           # + positional encoding

    hm = cst_ref[ROW_HM:ROW_HM + HM, 0:D]                 # (HM, D) head 0/1 mask
    hm_bf = hm.astype(bf16)
    mask_full = cst_ref[ROW_MFULL:ROW_MFULL + NT, :]      # (NT, HM)
    mask_last = cst_ref[ROW_MLAST:ROW_MLAST + N_NODES, :]  # (N, HM)
    sel = cst_ref[ROW_SEL:ROW_SEL + N_NODES, 0:NT]        # (N, NT) one-hot t=T-1

    emb = None
    for l in range(LAYERS):                               # static unroll
        last = l == LAYERS - 1
        wa = wbig_ref[l]                                  # (D, 384) bf16
        r = ROW_TV + 8 * l
        bqkv = cst_ref[r + 0:r + 1, 0:3 * D]
        bo = cst_ref[r + 1:r + 2, 0:D]
        b1 = cst_ref[r + 2:r + 3, 0:FF]
        b2 = cst_ref[r + 3:r + 4, 0:D]
        ln1g, ln1b = cst_ref[r + 4:r + 5, 0:D], cst_ref[r + 5:r + 6, 0:D]
        ln2g, ln2b = cst_ref[r + 6:r + 7, 0:D], cst_ref[r + 7:r + 8, 0:D]

        if last:
            # only the last time-step of each sequence feeds out[-1]; pick those
            # rows with an exact one-hot selector matmul (stays flat 2-D, no
            # strided slice / reshape relayout).
            xq = jnp.dot(sel, x2d, preferred_element_type=f32)          # (N, D)
            kv = _mmb(x2d, wa[:, D:3 * D]) + bqkv[:, D:3 * D]           # (NT, 2D)
            q = _mmb(xq, wa[:, 0:D]) + bqkv[:, 0:D]                     # (N, D)
            k, v = kv[:, 0:D], kv[:, D:2 * D]
            mask = mask_last
        else:
            qkv = _mmb(x2d, wa[:, 0:3 * D]) + bqkv                      # (NT, 3D)
            q, k, v = qkv[:, 0:D], qkv[:, D:2 * D], qkv[:, 2 * D:3 * D]
            xq = x2d
            mask = mask_full

        # fused 4-head attention: k/v stacked xHEADS along sublanes and masked
        # block-diagonally -> one lane-dense score matmul + one PV matmul for
        # all heads.  1/sqrt(DH) already folded into the q weights.  The
        # per-head softmax denominators come out of the same PV matmul via the
        # appended head-mask columns (segmented sums); the shared row max
        # cancels per head.
        k_st = (jnp.concatenate([k] * HEADS, axis=0) * hm).astype(bf16)  # (HM, D)
        v_st = (jnp.concatenate([v] * HEADS, axis=0) * hm).astype(bf16)
        vd = jnp.concatenate([v_st, hm_bf], axis=1)                      # (HM, 2D)

        s = lax.dot_general(q.astype(bf16), k_st, (((1,), (1,)), ((), ())),
                            preferred_element_type=f32) + mask           # (rows, HM)
        p = jnp.exp(s - jnp.max(s, axis=-1, keepdims=True))
        pv = jnp.dot(p.astype(bf16), vd, preferred_element_type=f32)     # (rows, 2D)
        o = pv[:, 0:D] * pl.reciprocal(pv[:, D:2 * D], approx=True)

        attn = _mmb(o, wa[:, 3 * D:4 * D]) + bo                          # out_proj
        y = _layernorm(xq + attn, ln1g, ln1b)                            # norm1
        hid = _gelu_tanh(_mmb(y, wa[:, 4 * D:4 * D + FF]) + b1)          # (rows, FF)
        ffo = lax.dot_general(hid.astype(bf16),
                              wa[:, 4 * D + FF:4 * D + 2 * FF],          # w2^T
                              (((1,), (1,)), ((), ())),
                              preferred_element_type=f32) + b2
        y = _layernorm(y + ffo, ln2g, ln2b)                              # norm2

        if last:
            emb = y                                                      # (N, D)
        else:
            x2d = y

    # ---- stage D: output projection, lane-dense (N, 128) store ---------------
    out_ref[...] = _mmb(emb, out_w) + out_b


# ------------------------------ wrapper / packing -------------------------------

def pack_inputs(x, adj, params, pe, train_idx):
    scale = 1.0 / math.sqrt(DH)

    # bf16 per-batch input slab (B, NT_TR, D), raw features zero-padded to D
    xp = jnp.zeros((B, N_TRAIN, T, D), jnp.float32).at[..., :F_IN].set(x)
    x_slab = xp.reshape(B, NT_TR, D).astype(jnp.bfloat16)

    # bf16 per-layer transformer weight slab (L, D, 384): [wqkv*|wo|w1|w2^T]
    # (q columns pre-scaled by 1/sqrt(DH))
    wq = params['wqkv'][:, :, :D] * scale
    wqkv = jnp.concatenate([wq, params['wqkv'][:, :, D:]], axis=2)
    w2t = jnp.swapaxes(params['w2'], 1, 2)                       # (L, D, FF)
    wbig = jnp.concatenate([wqkv, params['wo'], params['w1'], w2t],
                           axis=2).astype(jnp.bfloat16)          # (L, D, 384)

    # bf16 misc weight slab (D, 256): [fc1(pad)|fc2|gcn|agg|out(pad->128)]
    fc1p = jnp.zeros((D, D), jnp.float32).at[:F_IN, :].set(params['fc1_w'])
    adj_train = adj[:, train_idx]                                # (N, N_TRAIN)
    agg = jnp.kron(adj_train, jnp.eye(T, dtype=jnp.float32))     # (NT, NT_TR)
    outp = jnp.zeros((D, OUTW), jnp.float32).at[:, :HORIZON].set(params['out_w'])
    wmisc = jnp.concatenate([fc1p, params['fc2_w'], params['gcn_w'], agg, outp],
                            axis=1).astype(jnp.bfloat16)         # (D, 256)

    # f32 constants slab (R_CONST, 128)
    c = jnp.zeros((R_CONST, 128), jnp.float32)
    pe_tile = jnp.tile(pe[:T], (N_NODES, 1))                     # (NT, D)
    c = c.at[ROW_PE:ROW_PE + NT, :D].set(pe_tile)
    c = c.at[ROW_BIAS + 0, :D].set(params['fc1_b'])
    c = c.at[ROW_BIAS + 1, :D].set(params['fc2_b'])
    c = c.at[ROW_BIAS + 2, :D].set(params['gcn_b'])
    c = c.at[ROW_BIAS + 3, :HORIZON].set(params['out_b'])
    sel = jnp.zeros((N_NODES, NT), jnp.float32)
    sel = sel.at[jnp.arange(N_NODES), jnp.arange(N_NODES) * T + (T - 1)].set(1.0)
    c = c.at[ROW_SEL:ROW_SEL + N_NODES, :NT].set(sel)
    for l in range(LAYERS):
        r = ROW_TV + 8 * l
        bq = params['bqkv'][l].at[:D].multiply(scale)            # fold q scale
        c = c.at[r + 0, :3 * D].set(bq)
        c = c.at[r + 1, :D].set(params['bo'][l])
        c = c.at[r + 2, :FF].set(params['b1'][l])
        c = c.at[r + 3, :D].set(params['b2'][l])
        c = c.at[r + 4, :D].set(params['ln1g'][l])
        c = c.at[r + 5, :D].set(params['ln1b'][l])
        c = c.at[r + 6, :D].set(params['ln2g'][l])
        c = c.at[r + 7, :D].set(params['ln2b'][l])
    # per-batch sequence masks (flat (node,time) rows), tiled xHEADS along lanes
    seq = jnp.arange(NT) // T
    mfull = jnp.where(seq[:, None] == seq[None, :], 0.0, NEG)    # (NT, NT)
    c = c.at[ROW_MFULL:ROW_MFULL + NT, :].set(jnp.tile(mfull, (1, HEADS)))
    mlast = jnp.where(jnp.arange(N_NODES)[:, None] == seq[None, :], 0.0, NEG)
    c = c.at[ROW_MLAST:ROW_MLAST + N_NODES, :].set(jnp.tile(mlast, (1, HEADS)))
    # head-block 0/1 mask (HM, D)
    hrow = jnp.arange(HM) // NT
    hcol = jnp.arange(D) // DH
    hmask = (hrow[:, None] == hcol[None, :]).astype(jnp.float32)
    c = c.at[ROW_HM:ROW_HM + HM, :D].set(hmask)

    return x_slab, wbig, wmisc, c


def ggtn_forward(x, adj, params, pe, train_idx):
    x_slab, wbig, wmisc, consts = pack_inputs(x, adj, params, pe, train_idx)
    out = pl.pallas_call(
        ggtn_kernel,
        out_shape=jax.ShapeDtypeStruct((B, N_NODES, OUTW), jnp.float32),
        grid=(B,),
        in_specs=[
            pl.BlockSpec((None, NT_TR, D), lambda b: (b, 0, 0)),     # per-batch
            pl.BlockSpec((LAYERS, D, W_A), lambda b: (0, 0, 0)),     # resident
            pl.BlockSpec((D, W_M), lambda b: (0, 0)),                # resident
            pl.BlockSpec((R_CONST, 128), lambda b: (0, 0)),          # resident
        ],
        out_specs=pl.BlockSpec((None, N_NODES, OUTW), lambda b: (b, 0, 0)),
        compiler_params=pltpu.CompilerParams(
            dimension_semantics=("parallel",)),                      # 2 TCs on v7x
        cost_estimate=pl.CostEstimate(flops=4_500_000,
                                      transcendentals=20_000,
                                      bytes_accessed=200_000),
    )(x_slab, wbig, wmisc, consts)
    return out[:, :, :HORIZON]


def make_positional_encoding(max_len, d_model):
    position = jnp.arange(max_len, dtype=jnp.float32)[:, None]
    div_term = jnp.exp(jnp.arange(0, d_model, 2, dtype=jnp.float32)
                       * (-math.log(10000.0) / d_model))
    pe = jnp.zeros((max_len, d_model), jnp.float32)
    pe = pe.at[:, 0::2].set(jnp.sin(position * div_term))
    pe = pe.at[:, 1::2].set(jnp.cos(position * div_term))
    return pe


def init_params(key):
    ks = jax.random.split(key, 16)
    c = iter(range(16))

    def rnd(shape, scale):
        return scale * jax.random.normal(ks[next(c)], shape, dtype=jnp.float32)

    return dict(
        fc1_w=rnd((F_IN, D), 0.30), fc1_b=rnd((D,), 0.10),
        fc2_w=rnd((D, D), 0.20),    fc2_b=rnd((D,), 0.10),
        gcn_w=rnd((D, D), 0.20),    gcn_b=rnd((D,), 0.10),
        wqkv=rnd((LAYERS, D, 3 * D), 0.10), bqkv=rnd((LAYERS, 3 * D), 0.05),
        wo=rnd((LAYERS, D, D), 0.10),       bo=rnd((LAYERS, D), 0.05),
        w1=rnd((LAYERS, D, FF), 0.10),      b1=rnd((LAYERS, FF), 0.05),
        w2=rnd((LAYERS, FF, D), 0.10),      b2=rnd((LAYERS, D), 0.05),
        ln1g=jnp.ones((LAYERS, D), jnp.float32),
        ln1b=jnp.zeros((LAYERS, D), jnp.float32),
        ln2g=jnp.ones((LAYERS, D), jnp.float32),
        ln2b=jnp.zeros((LAYERS, D), jnp.float32),
        out_w=rnd((D, HORIZON), 0.15), out_b=rnd((HORIZON,), 0.05),
    )


# --------------------------- pure-JAX reference (sanity) ------------------------

def ggtn_reference(x, adj, params, pe, train_idx):
    lrelu = lambda v: jnp.where(v >= 0.0, v, ALPHA * v)

    def layernorm(z, g, b):
        mu = z.mean(-1, keepdims=True)
        var = ((z - mu) ** 2).mean(-1, keepdims=True)
        return (z - mu) / jnp.sqrt(var + EPS) * g + b

    h = lrelu(x @ params['fc1_w'] + params['fc1_b'])
    h = lrelu(h @ params['fc2_w'] + params['fc2_b'])          # (B, Ntr, T, D)
    adj_train = adj[:, train_idx]
    g = jnp.einsum('vw,bwtd->bvtd', adj_train, h)             # (B, N, T, D)
    g = lrelu(g @ params['gcn_w'] + params['gcn_b'])

    xs = g.reshape(B * N_NODES, T, D) + pe[:T][None]
    for l in range(LAYERS):
        qkv = xs @ params['wqkv'][l] + params['bqkv'][l]
        q, k, v = qkv[..., :D], qkv[..., D:2 * D], qkv[..., 2 * D:]
        q = q.reshape(B * N_NODES, T, HEADS, DH).transpose(0, 2, 1, 3)
        k = k.reshape(B * N_NODES, T, HEADS, DH).transpose(0, 2, 1, 3)
        v = v.reshape(B * N_NODES, T, HEADS, DH).transpose(0, 2, 1, 3)
        s = jnp.einsum('bhqd,bhkd->bhqk', q, k) / math.sqrt(DH)
        p = jax.nn.softmax(s, axis=-1)
        a = jnp.einsum('bhqk,bhkd->bhqd', p, v)
        a = a.transpose(0, 2, 1, 3).reshape(B * N_NODES, T, D)
        a = a @ params['wo'][l] + params['bo'][l]
        xs = layernorm(xs + a, params['ln1g'][l], params['ln1b'][l])
        f = jax.nn.gelu(xs @ params['w1'][l] + params['b1'][l], approximate=False)
        f = f @ params['w2'][l] + params['b2'][l]
        xs = layernorm(xs + f, params['ln2g'][l], params['ln2b'][l])
    emb = xs[:, -1, :]
    pred = emb @ params['out_w'] + params['out_b']
    return pred.reshape(B, N_NODES, HORIZON)


# ------------------------------------- main --------------------------------------

if __name__ == "__main__":
    key = jax.random.PRNGKey(0)
    kx, ka, kp = jax.random.split(key, 3)

    x = jax.random.normal(kx, (B, N_TRAIN, T, F_IN), dtype=jnp.float32)
    a = jax.random.uniform(ka, (N_NODES, N_NODES), dtype=jnp.float32,
                           minval=0.1, maxval=1.0)
    adj = a / jnp.sum(a, axis=1, keepdims=True)        # row-normalized adjacency
    train_idx = jnp.arange(N_TRAIN)
    params = init_params(kp)
    pe = make_positional_encoding(64, D)

    out = ggtn_forward(x, adj, params, pe, train_idx)
    out = jax.block_until_ready(out)
    assert out.shape == (B, N_NODES, HORIZON), out.shape

    ref = ggtn_reference(x, adj, params, pe, train_idx)
    max_err = float(jnp.max(jnp.abs(out - ref)))
    # bf16 MXU operands everywhere + tanh-GELU + approx reciprocal vs f32/erf ref
    if max_err > 5e-2:
        raise AssertionError(f"kernel vs reference mismatch, max_err={max_err}")

    print("KERNEL_OK")
</pallas_src>

<mosaic_0001>
module attributes {stable_mosaic.version = 11 : i64} {
  func.func @ggtn_kernel(%arg0: i32, %arg1: memref<1x32x32xbf16, #tpu.memory_space<vmem>>, %arg2: memref<2x32x384xbf16, #tpu.memory_space<vmem>>, %arg3: memref<32x256xbf16, #tpu.memory_space<vmem>>, %arg4: memref<232x128xf32, #tpu.memory_space<vmem>>, %arg5: memref<1x4x128xf32, #tpu.memory_space<vmem>>) attributes {dimension_semantics = [#tpu.dimension_semantics<parallel>], iteration_bounds = array<i64: 2>, scalar_prefetch = 0 : i64, scratch_operands = 0 : i64, tpu.core_type = #tpu.core_type<tc>, window_params = [{transform_indices = @transform_0, window_bounds = array<i64: 1, 32, 32>}, {pipeline_mode = #tpu.pipeline_mode<synchronous>, transform_indices = @transform_1, window_bounds = array<i64: 2, 32, 384>}, {pipeline_mode = #tpu.pipeline_mode<synchronous>, transform_indices = @transform_2, window_bounds = array<i64: 32, 256>}, {pipeline_mode = #tpu.pipeline_mode<synchronous>, transform_indices = @transform_3, window_bounds = array<i64: 232, 128>}, {transform_indices = @transform_4, window_bounds = array<i64: 1, 4, 128>}]} {
    %c0 = arith.constant 0 : index
    %c0_0 = arith.constant 0 : index
    %0 = vector.load %arg3[%c0, %c0_0] : memref<32x256xbf16, #tpu.memory_space<vmem>>, vector<32x256xbf16>
    %1 = vector.extract_strided_slice %0 {offsets = [0, 0], sizes = [32, 32], strides = [1, 1]} : vector<32x256xbf16> to vector<32x32xbf16>
    %2 = vector.extract_strided_slice %0 {offsets = [0, 32], sizes = [32, 32], strides = [1, 1]} : vector<32x256xbf16> to vector<32x32xbf16>
    %3 = vector.extract_strided_slice %0 {offsets = [0, 64], sizes = [32, 32], strides = [1, 1]} : vector<32x256xbf16> to vector<32x32xbf16>
    %4 = vector.extract_strided_slice %0 {offsets = [0, 96], sizes = [32, 32], strides = [1, 1]} : vector<32x256xbf16> to vector<32x32xbf16>
    %5 = vector.extract_strided_slice %0 {offsets = [0, 128], sizes = [32, 128], strides = [1, 1]} : vector<32x256xbf16> to vector<32x128xbf16>
    %c32 = arith.constant 32 : index
    %c0_1 = arith.constant 0 : index
    %6 = vector.load %arg4[%c32, %c0_1] : memref<232x128xf32, #tpu.memory_space<vmem>>, vector<1x32xf32>
    %c33 = arith.constant 33 : index
    %c0_2 = arith.constant 0 : index
    %7 = vector.load %arg4[%c33, %c0_2] : memref<232x128xf32, #tpu.memory_space<vmem>>, vector<1x32xf32>
    %c34 = arith.constant 34 : index
    %c0_3 = arith.constant 0 : index
    %8 = vector.load %arg4[%c34, %c0_3] : memref<232x128xf32, #tpu.memory_space<vmem>>, vector<1x32xf32>
    %c35 = arith.constant 35 : index
    %c0_4 = arith.constant 0 : index
    %9 = vector.load %arg4[%c35, %c0_4] : memref<232x128xf32, #tpu.memory_space<vmem>>, vector<1x128xf32>
    %c0_5 = arith.constant 0 : index
    %c0_6 = arith.constant 0 : index
    %c0_7 = arith.constant 0 : index
    %10 = vector.load %arg1[%c0_5, %c0_6, %c0_7] : memref<1x32x32xbf16, #tpu.memory_space<vmem>>, vector<1x32x32xbf16>
    %11 = vector.shape_cast %10 : vector<1x32x32xbf16> to vector<32x32xbf16>
    %cst = arith.constant dense<0.000000e+00> : vector<32x32xf32>
    %12 = tpu.matmul %11, %1, %cst {dimension_numbers = #tpu.dot_dimension_numbers<[1], [0], [0], [1], [0, 0, 1, 1], [], []>} : vector<32x32xbf16>, vector<32x32xbf16>, vector<32x32xf32> -> vector<32x32xf32>
    %13 = vector.broadcast %6 : vector<1x32xf32> to vector<32x32xf32>
    %14 = arith.addf %12, %13 : vector<32x32xf32>
    %cst_8 = arith.constant 0.000000e+00 : f32
    %15 = vector.broadcast %cst_8 : f32 to vector<32x32xf32>
    %16 = arith.cmpf oge, %14, %15 : vector<32x32xf32>
    %cst_9 = arith.constant 2.000000e-01 : f32
    %17 = vector.broadcast %cst_9 : f32 to vector<32x32xf32>
    %18 = arith.mulf %17, %14 : vector<32x32xf32>
    %19 = arith.select %16, %14, %18 : vector<32x32xi1>, vector<32x32xf32>
    %20 = arith.truncf %19 : vector<32x32xf32> to vector<32x32xbf16>
    %cst_10 = arith.constant dense<0.000000e+00> : vector<32x32xf32>
    %21 = tpu.matmul %20, %2, %cst_10 {dimension_numbers = #tpu.dot_dimension_numbers<[1], [0], [0], [1], [0, 0, 1, 1], [], []>} : vector<32x32xbf16>, vector<32x32xbf16>, vector<32x32xf32> -> vector<32x32xf32>
    %22 = vector.broadcast %7 : vector<1x32xf32> to vector<32x32xf32>
    %23 = arith.addf %21, %22 : vector<32x32xf32>
    %cst_11 = arith.constant 0.000000e+00 : f32
    %24 = vector.broadcast %cst_11 : f32 to vector<32x32xf32>
    %25 = arith.cmpf oge, %23, %24 : vector<32x32xf32>
    %cst_12 = arith.constant 2.000000e-01 : f32
    %26 = vector.broadcast %cst_12 : f32 to vector<32x32xf32>
    %27 = arith.mulf %26, %23 : vector<32x32xf32>
    %28 = arith.select %25, %23, %27 : vector<32x32xi1>, vector<32x32xf32>
    %29 = arith.truncf %28 : vector<32x32xf32> to vector<32x32xbf16>
    %cst_13 = arith.constant dense<0.000000e+00> : vector<32x32xf32>
    %30 = tpu.matmul %4, %29, %cst_13 {dimension_numbers = #tpu.dot_dimension_numbers<[1], [0], [0], [1], [0, 0, 1, 1], [], []>} : vector<32x32xbf16>, vector<32x32xbf16>, vector<32x32xf32> -> vector<32x32xf32>
    %31 = arith.truncf %30 : vector<32x32xf32> to vector<32x32xbf16>
    %cst_14 = arith.constant dense<0.000000e+00> : vector<32x32xf32>
    %32 = tpu.matmul %31, %3, %cst_14 {dimension_numbers = #tpu.dot_dimension_numbers<[1], [0], [0], [1], [0, 0, 1, 1], [], []>} : vector<32x32xbf16>, vector<32x32xbf16>, vector<32x32xf32> -> vector<32x32xf32>
    %33 = vector.broadcast %8 : vector<1x32xf32> to vector<32x32xf32>
    %34 = arith.addf %32, %33 : vector<32x32xf32>
    %cst_15 = arith.constant 0.000000e+00 : f32
    %35 = vector.broadcast %cst_15 : f32 to vector<32x32xf32>
    %36 = arith.cmpf oge, %34, %35 : vector<32x32xf32>
    %cst_16 = arith.constant 2.000000e-01 : f32
    %37 = vector.broadcast %cst_16 : f32 to vector<32x32xf32>
    %38 = arith.mulf %37, %34 : vector<32x32xf32>
    %39 = arith.select %36, %34, %38 : vector<32x32xi1>, vector<32x32xf32>
    %c0_17 = arith.constant 0 : index
    %c0_18 = arith.constant 0 : index
    %40 = vector.load %arg4[%c0_17, %c0_18] : memref<232x128xf32, #tpu.memory_space<vmem>>, vector<32x32xf32>
    %41 = arith.addf %39, %40 : vector<32x32xf32>
    %c104 = arith.constant 104 : index
    %c0_19 = arith.constant 0 : index
    %42 = vector.load %arg4[%c104, %c0_19] : memref<232x128xf32, #tpu.memory_space<vmem>>, vector<128x32xf32>
    %43 = arith.truncf %42 : vector<128x32xf32> to vector<128x32xbf16>
    %c64 = arith.constant 64 : index
    %c0_20 = arith.constant 0 : index
    %44 = vector.load %arg4[%c64, %c0_20] : memref<232x128xf32, #tpu.memory_space<vmem>>, vector<32x128xf32>
    %c96 = arith.constant 96 : index
    %c0_21 = arith.constant 0 : index
    %45 = vector.load %arg4[%c96, %c0_21] : memref<232x128xf32, #tpu.memory_space<vmem>>, vector<4x128xf32>
    %c40 = arith.constant 40 : index
    %c0_22 = arith.constant 0 : index
    %46 = vector.load %arg4[%c40, %c0_22] : memref<232x128xf32, #tpu.memory_space<vmem>>, vector<4x32xf32>
    %c0_23 = arith.constant 0 : index
    %c0_24 = arith.constant 0 : index
    %c0_25 = arith.constant 0 : index
    %47 = vector.load %arg2[%c0_23, %c0_24, %c0_25] : memref<2x32x384xbf16, #tpu.memory_space<vmem>>, vector<1x32x384xbf16>
    %48 = vector.shape_cast %47 : vector<1x32x384xbf16> to vector<32x384xbf16>
    %c48 = arith.constant 48 : index
    %c0_26 = arith.constant 0 : index
    %49 = vector.load %arg4[%c48, %c0_26] : memref<232x128xf32, #tpu.memory_space<vmem>>, vector<1x96xf32>
    %c49 = arith.constant 49 : index
    %c0_27 = arith.constant 0 : index
    %50 = vector.load %arg4[%c49, %c0_27] : memref<232x128xf32, #tpu.memory_space<vmem>>, vector<1x32xf32>
    %c50 = arith.constant 50 : index
    %c0_28 = arith.constant 0 : index
    %51 = vector.load %arg4[%c50, %c0_28] : memref<232x128xf32, #tpu.memory_space<vmem>>, vector<1x128xf32>
    %c51 = arith.constant 51 : index
    %c0_29 = arith.constant 0 : index
    %52 = vector.load %arg4[%c51, %c0_29] : memref<232x128xf32, #tpu.memory_space<vmem>>, vector<1x32xf32>
    %c52 = arith.constant 52 : index
    %c0_30 = arith.constant 0 : index
    %53 = vector.load %arg4[%c52, %c0_30] : memref<232x128xf32, #tpu.memory_space<vmem>>, vector<1x32xf32>
    %c53 = arith.constant 53 : index
    %c0_31 = arith.constant 0 : index
    %54 = vector.load %arg4[%c53, %c0_31] : memref<232x128xf32, #tpu.memory_space<vmem>>, vector<1x32xf32>
    %c54 = arith.constant 54 : index
    %c0_32 = arith.constant 0 : index
    %55 = vector.load %arg4[%c54, %c0_32] : memref<232x128xf32, #tpu.memory_space<vmem>>, vector<1x32xf32>
    %c55 = arith.constant 55 : index
    %c0_33 = arith.constant 0 : index
    %56 = vector.load %arg4[%c55, %c0_33] : memref<232x128xf32, #tpu.memory_space<vmem>>, vector<1x32xf32>
    %57 = vector.extract_strided_slice %48 {offsets = [0, 0], sizes = [32, 96], strides = [1, 1]} : vector<32x384xbf16> to vector<32x96xbf16>
    %58 = arith.truncf %41 : vector<32x32xf32> to vector<32x32xbf16>
    %cst_34 = arith.constant dense<0.000000e+00> : vector<32x96xf32>
    %59 = tpu.matmul %58, %57, %cst_34 {dimension_numbers = #tpu.dot_dimension_numbers<[1], [0], [0], [1], [0, 0, 1, 1], [], []>} : vector<32x32xbf16>, vector<32x96xbf16>, vector<32x96xf32> -> vector<32x96xf32>
    %60 = vector.broadcast %49 : vector<1x96xf32> to vector<32x96xf32>
    %61 = arith.addf %59, %60 : vector<32x96xf32>
    %62 = vector.extract_strided_slice %61 {offsets = [0, 0], sizes = [32, 32], strides = [1, 1]} : vector<32x96xf32> to vector<32x32xf32>
    %63 = vector.extract_strided_slice %61 {offsets = [0, 32], sizes = [32, 32], strides = [1, 1]} : vector<32x96xf32> to vector<32x32xf32>
    %64 = vector.extract_strided_slice %61 {offsets = [0, 64], sizes = [32, 32], strides = [1, 1]} : vector<32x96xf32> to vector<32x32xf32>
    %65 = tpu.concatenate %63, %63, %63, %63 in 0 : vector<32x32xf32>, vector<32x32xf32>, vector<32x32xf32>, vector<32x32xf32> -> vector<128x32xf32>
    %66 = arith.mulf %65, %42 : vector<128x32xf32>
    %67 = arith.truncf %66 : vector<128x32xf32> to vector<128x32xbf16>
    %68 = tpu.concatenate %64, %64, %64, %64 in 0 : vector<32x32xf32>, vector<32x32xf32>, vector<32x32xf32>, vector<32x32xf32> -> vector<128x32xf32>
    %69 = arith.mulf %68, %42 : vector<128x32xf32>
    %70 = arith.truncf %69 : vector<128x32xf32> to vector<128x32xbf16>
    %71 = tpu.concatenate %70, %43 in 1 : vector<128x32xbf16>, vector<128x32xbf16> -> vector<128x64xbf16>
    %72 = arith.truncf %62 : vector<32x32xf32> to vector<32x32xbf16>
    %cst_35 = arith.constant dense<0.000000e+00> : vector<32x128xf32>
    %73 = tpu.matmul %72, %67, %cst_35 {dimension_numbers = #tpu.dot_dimension_numbers<[1], [1], [0], [0], [0, 0, 1, 0], [], []>} : vector<32x32xbf16>, vector<128x32xbf16>, vector<32x128xf32> -> vector<32x128xf32>
    %74 = arith.addf %73, %44 : vector<32x128xf32>
    %cst_36 = arith.constant dense<0xFF800000> : vector<32xf32>
    %75 = vector.multi_reduction <maximumf>, %74, %cst_36 [1] : vector<32x128xf32> to vector<32xf32>
    %76 = vector.shape_cast %75 : vector<32xf32> to vector<32x1xf32>
    %77 = vector.broadcast %76 : vector<32x1xf32> to vector<32x128xf32>
    %78 = arith.subf %74, %77 : vector<32x128xf32>
    %79 = math.exp %78 : vector<32x128xf32>
    %80 = arith.truncf %79 : vector<32x128xf32> to vector<32x128xbf16>
    %cst_37 = arith.constant dense<0.000000e+00> : vector<32x64xf32>
    %81 = tpu.matmul %80, %71, %cst_37 {dimension_numbers = #tpu.dot_dimension_numbers<[1], [0], [0], [1], [0, 0, 1, 1], [], []>} : vector<32x128xbf16>, vector<128x64xbf16>, vector<32x64xf32> -> vector<32x64xf32>
    %82 = vector.extract_strided_slice %81 {offsets = [0, 0], sizes = [32, 32], strides = [1, 1]} : vector<32x64xf32> to vector<32x32xf32>
    %83 = vector.extract_strided_slice %81 {offsets = [0, 32], sizes = [32, 32], strides = [1, 1]} : vector<32x64xf32> to vector<32x32xf32>
    %84 = tpu.reciprocal %83 {approx = true} : vector<32x32xf32> -> vector<32x32xf32>
    %85 = arith.mulf %82, %84 : vector<32x32xf32>
    %86 = vector.extract_strided_slice %48 {offsets = [0, 96], sizes = [32, 32], strides = [1, 1]} : vector<32x384xbf16> to vector<32x32xbf16>
    %87 = arith.truncf %85 : vector<32x32xf32> to vector<32x32xbf16>
    %cst_38 = arith.constant dense<0.000000e+00> : vector<32x32xf32>
    %88 = tpu.matmul %87, %86, %cst_38 {dimension_numbers = #tpu.dot_dimension_numbers<[1], [0], [0], [1], [0, 0, 1, 1], [], []>} : vector<32x32xbf16>, vector<32x32xbf16>, vector<32x32xf32> -> vector<32x32xf32>
    %89 = vector.broadcast %50 : vector<1x32xf32> to vector<32x32xf32>
    %90 = arith.addf %88, %89 : vector<32x32xf32>
    %91 = arith.addf %41, %90 : vector<32x32xf32>
    %cst_39 = arith.constant dense<0.000000e+00> : vector<32xf32>
    %92 = vector.multi_reduction <add>, %91, %cst_39 [1] : vector<32x32xf32> to vector<32xf32>
    %93 = vector.shape_cast %92 : vector<32xf32> to vector<32x1xf32>
    %cst_40 = arith.constant 3.200000e+01 : f32
    %94 = vector.broadcast %cst_40 : f32 to vector<32x1xf32>
    %95 = arith.divf %93, %94 : vector<32x1xf32>
    %96 = vector.broadcast %95 : vector<32x1xf32> to vector<32x32xf32>
    %97 = arith.subf %91, %96 : vector<32x32xf32>
    %98 = arith.mulf %97, %97 : vector<32x32xf32>
    %cst_41 = arith.constant dense<0.000000e+00> : vector<32xf32>
    %99 = vector.multi_reduction <add>, %98, %cst_41 [1] : vector<32x32xf32> to vector<32xf32>
    %100 = vector.shape_cast %99 : vector<32xf32> to vector<32x1xf32>
    %cst_42 = arith.constant 3.200000e+01 : f32
    %101 = vector.broadcast %cst_42 : f32 to vector<32x1xf32>
    %102 = arith.divf %100, %101 : vector<32x1xf32>
    %103 = vector.broadcast %95 : vector<32x1xf32> to vector<32x32xf32>
    %104 = arith.subf %91, %103 : vector<32x32xf32>
    %cst_43 = arith.constant 9.99999974E-6 : f32
    %105 = vector.broadcast %cst_43 : f32 to vector<32x1xf32>
    %106 = arith.addf %102, %105 : vector<32x1xf32>
    %107 = math.rsqrt %106 : vector<32x1xf32>
    %108 = vector.broadcast %107 : vector<32x1xf32> to vector<32x32xf32>
    %109 = arith.mulf %104, %108 : vector<32x32xf32>
    %110 = vector.broadcast %53 : vector<1x32xf32> to vector<32x32xf32>
    %111 = arith.mulf %109, %110 : vector<32x32xf32>
    %112 = vector.broadcast %54 : vector<1x32xf32> to vector<32x32xf32>
    %113 = arith.addf %111, %112 : vector<32x32xf32>
    %114 = vector.extract_strided_slice %48 {offsets = [0, 128], sizes = [32, 128], strides = [1, 1]} : vector<32x384xbf16> to vector<32x128xbf16>
    %115 = arith.truncf %113 : vector<32x32xf32> to vector<32x32xbf16>
    %cst_44 = arith.constant dense<0.000000e+00> : vector<32x128xf32>
    %116 = tpu.matmul %115, %114, %cst_44 {dimension_numbers = #tpu.dot_dimension_numbers<[1], [0], [0], [1], [0, 0, 1, 1], [], []>} : vector<32x32xbf16>, vector<32x128xbf16>, vector<32x128xf32> -> vector<32x128xf32>
    %117 = vector.broadcast %51 : vector<1x128xf32> to vector<32x128xf32>
    %118 = arith.addf %116, %117 : vector<32x128xf32>
    %cst_45 = arith.constant 5.000000e-01 : f32
    %119 = vector.broadcast %cst_45 : f32 to vector<32x128xf32>
    %120 = arith.mulf %119, %118 : vector<32x128xf32>
    %121 = arith.mulf %118, %118 : vector<32x128xf32>
    %122 = arith.mulf %121, %118 : vector<32x128xf32>
    %cst_46 = arith.constant 4.471500e-02 : f32
    %123 = vector.broadcast %cst_46 : f32 to vector<32x128xf32>
    %124 = arith.mulf %123, %122 : vector<32x128xf32>
    %125 = arith.addf %118, %124 : vector<32x128xf32>
    %cst_47 = arith.constant 0.797884583 : f32
    %126 = vector.broadcast %cst_47 : f32 to vector<32x128xf32>
    %127 = arith.mulf %126, %125 : vector<32x128xf32>
    %128 = math.tanh %127 : vector<32x128xf32>
    %cst_48 = arith.constant 1.000000e+00 : f32
    %129 = vector.broadcast %cst_48 : f32 to vector<32x128xf32>
    %130 = arith.addf %129, %128 : vector<32x128xf32>
    %131 = arith.mulf %120, %130 : vector<32x128xf32>
    %132 = arith.truncf %131 : vector<32x128xf32> to vector<32x128xbf16>
    %133 = vector.extract_strided_slice %48 {offsets = [0, 256], sizes = [32, 128], strides = [1, 1]} : vector<32x384xbf16> to vector<32x128xbf16>
    %cst_49 = arith.constant dense<0.000000e+00> : vector<32x32xf32>
    %134 = tpu.matmul %132, %133, %cst_49 {dimension_numbers = #tpu.dot_dimension_numbers<[1], [1], [0], [0], [0, 0, 1, 0], [], []>} : vector<32x128xbf16>, vector<32x128xbf16>, vector<32x32xf32> -> vector<32x32xf32>
    %135 = vector.broadcast %52 : vector<1x32xf32> to vector<32x32xf32>
    %136 = arith.addf %134, %135 : vector<32x32xf32>
    %137 = arith.addf %113, %136 : vector<32x32xf32>
    %cst_50 = arith.constant dense<0.000000e+00> : vector<32xf32>
    %138 = vector.multi_reduction <add>, %137, %cst_50 [1] : vector<32x32xf32> to vector<32xf32>
    %139 = vector.shape_cast %138 : vector<32xf32> to vector<32x1xf32>
    %cst_51 = arith.constant 3.200000e+01 : f32
    %140 = vector.broadcast %cst_51 : f32 to vector<32x1xf32>
    %141 = arith.divf %139, %140 : vector<32x1xf32>
    %142 = vector.broadcast %141 : vector<32x1xf32> to vector<32x32xf32>
    %143 = arith.subf %137, %142 : vector<32x32xf32>
    %144 = arith.mulf %143, %143 : vector<32x32xf32>
    %cst_52 = arith.constant dense<0.000000e+00> : vector<32xf32>
    %145 = vector.multi_reduction <add>, %144, %cst_52 [1] : vector<32x32xf32> to vector<32xf32>
    %146 = vector.shape_cast %145 : vector<32xf32> to vector<32x1xf32>
    %cst_53 = arith.constant 3.200000e+01 : f32
    %147 = vector.broadcast %cst_53 : f32 to vector<32x1xf32>
    %148 = arith.divf %146, %147 : vector<32x1xf32>
    %149 = vector.broadcast %141 : vector<32x1xf32> to vector<32x32xf32>
    %150 = arith.subf %137, %149 : vector<32x32xf32>
    %cst_54 = arith.constant 9.99999974E-6 : f32
    %151 = vector.broadcast %cst_54 : f32 to vector<32x1xf32>
    %152 = arith.addf %148, %151 : vector<32x1xf32>
    %153 = math.rsqrt %152 : vector<32x1xf32>
    %154 = vector.broadcast %153 : vector<32x1xf32> to vector<32x32xf32>
    %155 = arith.mulf %150, %154 : vector<32x32xf32>
    %156 = vector.broadcast %55 : vector<1x32xf32> to vector<32x32xf32>
    %157 = arith.mulf %155, %156 : vector<32x32xf32>
    %158 = vector.broadcast %56 : vector<1x32xf32> to vector<32x32xf32>
    %159 = arith.addf %157, %158 : vector<32x32xf32>
    %c1 = arith.constant 1 : index
    %c0_55 = arith.constant 0 : index
    %c0_56 = arith.constant 0 : index
    %160 = vector.load %arg2[%c1, %c0_55, %c0_56] : memref<2x32x384xbf16, #tpu.memory_space<vmem>>, vector<1x32x384xbf16>
    %161 = vector.shape_cast %160 : vector<1x32x384xbf16> to vector<32x384xbf16>
    %c56 = arith.constant 56 : index
    %c0_57 = arith.constant 0 : index
    %162 = vector.load %arg4[%c56, %c0_57] : memref<232x128xf32, #tpu.memory_space<vmem>>, vector<1x96xf32>
    %c57 = arith.constant 57 : index
    %c0_58 = arith.constant 0 : index
    %163 = vector.load %arg4[%c57, %c0_58] : memref<232x128xf32, #tpu.memory_space<vmem>>, vector<1x32xf32>
    %c58 = arith.constant 58 : index
    %c0_59 = arith.constant 0 : index
    %164 = vector.load %arg4[%c58, %c0_59] : memref<232x128xf32, #tpu.memory_space<vmem>>, vector<1x128xf32>
    %c59 = arith.constant 59 : index
    %c0_60 = arith.constant 0 : index
    %165 = vector.load %arg4[%c59, %c0_60] : memref<232x128xf32, #tpu.memory_space<vmem>>, vector<1x32xf32>
    %c60 = arith.constant 60 : index
    %c0_61 = arith.constant 0 : index
    %166 = vector.load %arg4[%c60, %c0_61] : memref<232x128xf32, #tpu.memory_space<vmem>>, vector<1x32xf32>
    %c61 = arith.constant 61 : index
    %c0_62 = arith.constant 0 : index
    %167 = vector.load %arg4[%c61, %c0_62] : memref<232x128xf32, #tpu.memory_space<vmem>>, vector<1x32xf32>
    %c62 = arith.constant 62 : index
    %c0_63 = arith.constant 0 : index
    %168 = vector.load %arg4[%c62, %c0_63] : memref<232x128xf32, #tpu.memory_space<vmem>>, vector<1x32xf32>
    %c63 = arith.constant 63 : index
    %c0_64 = arith.constant 0 : index
    %169 = vector.load %arg4[%c63, %c0_64] : memref<232x128xf32, #tpu.memory_space<vmem>>, vector<1x32xf32>
    %cst_65 = arith.constant dense<0.000000e+00> : vector<4x32xf32>
    %170 = tpu.matmul %46, %159, %cst_65 {dimension_numbers = #tpu.dot_dimension_numbers<[1], [0], [0], [1], [0, 0, 1, 1], [], []>} : vector<4x32xf32>, vector<32x32xf32>, vector<4x32xf32> -> vector<4x32xf32>
    %171 = vector.extract_strided_slice %161 {offsets = [0, 32], sizes = [32, 64], strides = [1, 1]} : vector<32x384xbf16> to vector<32x64xbf16>
    %172 = arith.truncf %159 : vector<32x32xf32> to vector<32x32xbf16>
    %cst_66 = arith.constant dense<0.000000e+00> : vector<32x64xf32>
    %173 = tpu.matmul %172, %171, %cst_66 {dimension_numbers = #tpu.dot_dimension_numbers<[1], [0], [0], [1], [0, 0, 1, 1], [], []>} : vector<32x32xbf16>, vector<32x64xbf16>, vector<32x64xf32> -> vector<32x64xf32>
    %174 = vector.extract_strided_slice %162 {offsets = [0, 32], sizes = [1, 64], strides = [1, 1]} : vector<1x96xf32> to vector<1x64xf32>
    %175 = vector.broadcast %174 : vector<1x64xf32> to vector<32x64xf32>
    %176 = arith.addf %173, %175 : vector<32x64xf32>
    %177 = vector.extract_strided_slice %161 {offsets = [0, 0], sizes = [32, 32], strides = [1, 1]} : vector<32x384xbf16> to vector<32x32xbf16>
    %178 = arith.truncf %170 : vector<4x32xf32> to vector<4x32xbf16>
    %cst_67 = arith.constant dense<0.000000e+00> : vector<4x32xf32>
    %179 = tpu.matmul %178, %177, %cst_67 {dimension_numbers = #tpu.dot_dimension_numbers<[1], [0], [0], [1], [0, 0, 1, 1], [], []>} : vector<4x32xbf16>, vector<32x32xbf16>, vector<4x32xf32> -> vector<4x32xf32>
    %180 = vector.extract_strided_slice %162 {offsets = [0, 0], sizes = [1, 32], strides = [1, 1]} : vector<1x96xf32> to vector<1x32xf32>
    %181 = vector.broadcast %180 : vector<1x32xf32> to vector<4x32xf32>
    %182 = arith.addf %179, %181 : vector<4x32xf32>
    %183 = vector.extract_strided_slice %176 {offsets = [0, 0], sizes = [32, 32], strides = [1, 1]} : vector<32x64xf32> to vector<32x32xf32>
    %184 = vector.extract_strided_slice %176 {offsets = [0, 32], sizes = [32, 32], strides = [1, 1]} : vector<32x64xf32> to vector<32x32xf32>
    %185 = tpu.concatenate %183, %183, %183, %183 in 0 : vector<32x32xf32>, vector<32x32xf32>, vector<32x32xf32>, vector<32x32xf32> -> vector<128x32xf32>
    %186 = arith.mulf %185, %42 : vector<128x32xf32>
    %187 = arith.truncf %186 : vector<128x32xf32> to vector<128x32xbf16>
    %188 = tpu.concatenate %184, %184, %184, %184 in 0 : vector<32x32xf32>, vector<32x32xf32>, vector<32x32xf32>, vector<32x32xf32> -> vector<128x32xf32>
    %189 = arith.mulf %188, %42 : vector<128x32xf32>
    %190 = arith.truncf %189 : vector<128x32xf32> to vector<128x32xbf16>
    %191 = tpu.concatenate %190, %43 in 1 : vector<128x32xbf16>, vector<128x32xbf16> -> vector<128x64xbf16>
    %192 = arith.truncf %182 : vector<4x32xf32> to vector<4x32xbf16>
    %cst_68 = arith.constant dense<0.000000e+00> : vector<4x128xf32>
    %193 = tpu.matmul %192, %187, %cst_68 {dimension_numbers = #tpu.dot_dimension_numbers<[1], [1], [0], [0], [0, 0, 1, 0], [], []>} : vector<4x32xbf16>, vector<128x32xbf16>, vector<4x128xf32> -> vector<4x128xf32>
    %194 = arith.addf %193, %45 : vector<4x128xf32>
    %cst_69 = arith.constant dense<0xFF800000> : vector<4xf32>
    %195 = vector.multi_reduction <maximumf>, %194, %cst_69 [1] : vector<4x128xf32> to vector<4xf32>
    %196 = vector.shape_cast %195 : vector<4xf32> to vector<4x1xf32>
    %197 = vector.broadcast %196 : vector<4x1xf32> to vector<4x128xf32>
    %198 = arith.subf %194, %197 : vector<4x128xf32>
    %199 = math.exp %198 : vector<4x128xf32>
    %200 = arith.truncf %199 : vector<4x128xf32> to vector<4x128xbf16>
    %cst_70 = arith.constant dense<0.000000e+00> : vector<4x64xf32>
    %201 = tpu.matmul %200, %191, %cst_70 {dimension_numbers = #tpu.dot_dimension_numbers<[1], [0], [0], [1], [0, 0, 1, 1], [], []>} : vector<4x128xbf16>, vector<128x64xbf16>, vector<4x64xf32> -> vector<4x64xf32>
    %202 = vector.extract_strided_slice %201 {offsets = [0, 0], sizes = [4, 32], strides = [1, 1]} : vector<4x64xf32> to vector<4x32xf32>
    %203 = vector.extract_strided_slice %201 {offsets = [0, 32], sizes = [4, 32], strides = [1, 1]} : vector<4x64xf32> to vector<4x32xf32>
    %204 = tpu.reciprocal %203 {approx = true} : vector<4x32xf32> -> vector<4x32xf32>
    %205 = arith.mulf %202, %204 : vector<4x32xf32>
    %206 = vector.extract_strided_slice %161 {offsets = [0, 96], sizes = [32, 32], strides = [1, 1]} : vector<32x384xbf16> to vector<32x32xbf16>
    %207 = arith.truncf %205 : vector<4x32xf32> to vector<4x32xbf16>
    %cst_71 = arith.constant dense<0.000000e+00> : vector<4x32xf32>
    %208 = tpu.matmul %207, %206, %cst_71 {dimension_numbers = #tpu.dot_dimension_numbers<[1], [0], [0], [1], [0, 0, 1, 1], [], []>} : vector<4x32xbf16>, vector<32x32xbf16>, vector<4x32xf32> -> vector<4x32xf32>
    %209 = vector.broadcast %163 : vector<1x32xf32> to vector<4x32xf32>
    %210 = arith.addf %208, %209 : vector<4x32xf32>
    %211 = arith.addf %170, %210 : vector<4x32xf32>
    %cst_72 = arith.constant dense<0.000000e+00> : vector<4xf32>
    %212 = vector.multi_reduction <add>, %211, %cst_72 [1] : vector<4x32xf32> to vector<4xf32>
    %213 = vector.shape_cast %212 : vector<4xf32> to vector<4x1xf32>
    %cst_73 = arith.constant 3.200000e+01 : f32
    %214 = vector.broadcast %cst_73 : f32 to vector<4x1xf32>
    %215 = arith.divf %213, %214 : vector<4x1xf32>
    %216 = vector.broadcast %215 : vector<4x1xf32> to vector<4x32xf32>
    %217 = arith.subf %211, %216 : vector<4x32xf32>
    %218 = arith.mulf %217, %217 : vector<4x32xf32>
    %cst_74 = arith.constant dense<0.000000e+00> : vector<4xf32>
    %219 = vector.multi_reduction <add>, %218, %cst_74 [1] : vector<4x32xf32> to vector<4xf32>
    %220 = vector.shape_cast %219 : vector<4xf32> to vector<4x1xf32>
    %cst_75 = arith.constant 3.200000e+01 : f32
    %221 = vector.broadcast %cst_75 : f32 to vector<4x1xf32>
    %222 = arith.divf %220, %221 : vector<4x1xf32>
    %223 = vector.broadcast %215 : vector<4x1xf32> to vector<4x32xf32>
    %224 = arith.subf %211, %223 : vector<4x32xf32>
    %cst_76 = arith.constant 9.99999974E-6 : f32
    %225 = vector.broadcast %cst_76 : f32 to vector<4x1xf32>
    %226 = arith.addf %222, %225 : vector<4x1xf32>
    %227 = math.rsqrt %226 : vector<4x1xf32>
    %228 = vector.broadcast %227 : vector<4x1xf32> to vector<4x32xf32>
    %229 = arith.mulf %224, %228 : vector<4x32xf32>
    %230 = vector.broadcast %166 : vector<1x32xf32> to vector<4x32xf32>
    %231 = arith.mulf %229, %230 : vector<4x32xf32>
    %232 = vector.broadcast %167 : vector<1x32xf32> to vector<4x32xf32>
    %233 = arith.addf %231, %232 : vector<4x32xf32>
    %234 = vector.extract_strided_slice %161 {offsets = [0, 128], sizes = [32, 128], strides = [1, 1]} : vector<32x384xbf16> to vector<32x128xbf16>
    %235 = arith.truncf %233 : vector<4x32xf32> to vector<4x32xbf16>
    %cst_77 = arith.constant dense<0.000000e+00> : vector<4x128xf32>
    %236 = tpu.matmul %235, %234, %cst_77 {dimension_numbers = #tpu.dot_dimension_numbers<[1], [0], [0], [1], [0, 0, 1, 1], [], []>} : vector<4x32xbf16>, vector<32x128xbf16>, vector<4x128xf32> -> vector<4x128xf32>
    %237 = vector.broadcast %164 : vector<1x128xf32> to vector<4x128xf32>
    %238 = arith.addf %236, %237 : vector<4x128xf32>
    %cst_78 = arith.constant 5.000000e-01 : f32
    %239 = vector.broadcast %cst_78 : f32 to vector<4x128xf32>
    %240 = arith.mulf %239, %238 : vector<4x128xf32>
    %241 = arith.mulf %238, %238 : vector<4x128xf32>
    %242 = arith.mulf %241, %238 : vector<4x128xf32>
    %cst_79 = arith.constant 4.471500e-02 : f32
    %243 = vector.broadcast %cst_79 : f32 to vector<4x128xf32>
    %244 = arith.mulf %243, %242 : vector<4x128xf32>
    %245 = arith.addf %238, %244 : vector<4x128xf32>
    %cst_80 = arith.constant 0.797884583 : f32
    %246 = vector.broadcast %cst_80 : f32 to vector<4x128xf32>
    %247 = arith.mulf %246, %245 : vector<4x128xf32>
    %248 = math.tanh %247 : vector<4x128xf32>
    %cst_81 = arith.constant 1.000000e+00 : f32
    %249 = vector.broadcast %cst_81 : f32 to vector<4x128xf32>
    %250 = arith.addf %249, %248 : vector<4x128xf32>
    %251 = arith.mulf %240, %250 : vector<4x128xf32>
    %252 = arith.truncf %251 : vector<4x128xf32> to vector<4x128xbf16>
    %253 = vector.extract_strided_slice %161 {offsets = [0, 256], sizes = [32, 128], strides = [1, 1]} : vector<32x384xbf16> to vector<32x128xbf16>
    %cst_82 = arith.constant dense<0.000000e+00> : vector<4x32xf32>
    %254 = tpu.matmul %252, %253, %cst_82 {dimension_numbers = #tpu.dot_dimension_numbers<[1], [1], [0], [0], [0, 0, 1, 0], [], []>} : vector<4x128xbf16>, vector<32x128xbf16>, vector<4x32xf32> -> vector<4x32xf32>
    %255 = vector.broadcast %165 : vector<1x32xf32> to vector<4x32xf32>
    %256 = arith.addf %254, %255 : vector<4x32xf32>
    %257 = arith.addf %233, %256 : vector<4x32xf32>
    %cst_83 = arith.constant dense<0.000000e+00> : vector<4xf32>
    %258 = vector.multi_reduction <add>, %257, %cst_83 [1] : vector<4x32xf32> to vector<4xf32>
    %259 = vector.shape_cast %258 : vector<4xf32> to vector<4x1xf32>
    %cst_84 = arith.constant 3.200000e+01 : f32
    %260 = vector.broadcast %cst_84 : f32 to vector<4x1xf32>
    %261 = arith.divf %259, %260 : vector<4x1xf32>
    %262 = vector.broadcast %261 : vector<4x1xf32> to vector<4x32xf32>
    %263 = arith.subf %257, %262 : vector<4x32xf32>
    %264 = arith.mulf %263, %263 : vector<4x32xf32>
    %cst_85 = arith.constant dense<0.000000e+00> : vector<4xf32>
    %265 = vector.multi_reduction <add>, %264, %cst_85 [1] : vector<4x32xf32> to vector<4xf32>
    %266 = vector.shape_cast %265 : vector<4xf32> to vector<4x1xf32>
    %cst_86 = arith.constant 3.200000e+01 : f32
    %267 = vector.broadcast %cst_86 : f32 to vector<4x1xf32>
    %268 = arith.divf %266, %267 : vector<4x1xf32>
    %269 = vector.broadcast %261 : vector<4x1xf32> to vector<4x32xf32>
    %270 = arith.subf %257, %269 : vector<4x32xf32>
    %cst_87 = arith.constant 9.99999974E-6 : f32
    %271 = vector.broadcast %cst_87 : f32 to vector<4x1xf32>
    %272 = arith.addf %268, %271 : vector<4x1xf32>
    %273 = math.rsqrt %272 : vector<4x1xf32>
    %274 = vector.broadcast %273 : vector<4x1xf32> to vector<4x32xf32>
    %275 = arith.mulf %270, %274 : vector<4x32xf32>
    %276 = vector.broadcast %168 : vector<1x32xf32> to vector<4x32xf32>
    %277 = arith.mulf %275, %276 : vector<4x32xf32>
    %278 = vector.broadcast %169 : vector<1x32xf32> to vector<4x32xf32>
    %279 = arith.addf %277, %278 : vector<4x32xf32>
    %280 = arith.truncf %279 : vector<4x32xf32> to vector<4x32xbf16>
    %cst_88 = arith.constant dense<0.000000e+00> : vector<4x128xf32>
    %281 = tpu.matmul %280, %5, %cst_88 {dimension_numbers = #tpu.dot_dimension_numbers<[1], [0], [0], [1], [0, 0, 1, 1], [], []>} : vector<4x32xbf16>, vector<32x128xbf16>, vector<4x128xf32> -> vector<4x128xf32>
    %282 = vector.broadcast %9 : vector<1x128xf32> to vector<4x128xf32>
    %283 = arith.addf %281, %282 : vector<4x128xf32>
    %c0_89 = arith.constant 0 : index
    %c0_90 = arith.constant 0 : index
    %c0_91 = arith.constant 0 : index
    %284 = vector.load %arg5[%c0_89, %c0_90, %c0_91] : memref<1x4x128xf32, #tpu.memory_space<vmem>>, vector<1x4x128xf32>
    %285 = vector.shape_cast %284 : vector<1x4x128xf32> to vector<4x128xf32>
    %286 = vector.shape_cast %283 : vector<4x128xf32> to vector<1x4x128xf32>
    tpu.vector_store %arg5[%c0_89, %c0_90, %c0_91], %286 {strides = array<i32>} : memref<1x4x128xf32, #tpu.memory_space<vmem>>, vector<1x4x128xf32>,
    return
  }
  func.func @transform_0(%arg0: i32) -> (i32, i32, i32) {
    %c0_i32 = arith.constant 0 : i32
    %c0_i32_0 = arith.constant 0 : i32
    %c0_i32_1 = arith.constant 0 : i32
    return %arg0, %c0_i32, %c0_i32_0 : i32, i32, i32
  }
  func.func @transform_1(%arg0: i32) -> (i32, i32, i32) {
    %c0_i32 = arith.constant 0 : i32
    %c0_i32_0 = arith.constant 0 : i32
    %c0_i32_1 = arith.constant 0 : i32
    %c0_i32_2 = arith.constant 0 : i32
    return %c0_i32, %c0_i32_0, %c0_i32_1 : i32, i32, i32
  }
  func.func @transform_2(%arg0: i32) -> (i32, i32) {
    %c0_i32 = arith.constant 0 : i32
    %c0_i32_0 = arith.constant 0 : i32
    %c0_i32_1 = arith.constant 0 : i32
    return %c0_i32, %c0_i32_0 : i32, i32
  }
  func.func @transform_3(%arg0: i32) -> (i32, i32) {
    %c0_i32 = arith.constant 0 : i32
    %c0_i32_0 = arith.constant 0 : i32
    %c0_i32_1 = arith.constant 0 : i32
    return %c0_i32, %c0_i32_0 : i32, i32
  }
  func.func @transform_4(%arg0: i32) -> (i32, i32, i32) {
    %c0_i32 = arith.constant 0 : i32
    %c0_i32_0 = arith.constant 0 : i32
    %c0_i32_1 = arith.constant 0 : i32
    return %arg0, %c0_i32, %c0_i32_0 : i32, i32, i32
  }
}

</mosaic_0001>

<llo_original>
// kernel: tpu_custom_call.1
$region0: #{tpu_custom_call.1}
  #allocation0 [shape = 'u32[]', space=smem, size = 0x4, offset = 0x4, fixed_abs, tag = 'smem constant byte address 0x4 - core index']
  #allocation1 [shape = 'u32[144,128]{1,0:T(1,128)}', space=vmem, size = 0x12000, scoped, tag = 'internal scratch']
  %s0 = inlined_call_operand.hbm [shape: bf16[2,32,32], index: 0, kind: input, shape index: {}]
  %s1 = inlined_call_operand.hbm [shape: bf16[2,32,384], index: 1, kind: input, shape index: {}]
  %s2 = inlined_call_operand.hbm [shape: bf16[32,256], index: 2, kind: input, shape index: {}]
  %s3 = inlined_call_operand.hbm [shape: f32[232,128], index: 3, kind: input, shape index: {}]
  %s4 = inlined_call_operand.hbm [shape: f32[2,4,128], index: 4, kind: output, shape index: {}]
  %s5 = sld [smem:[#allocation0]]
  $region65: #{tpu_custom_call.1} parent=0
    _
  %s7 = ssub.s32 1, %s5
  %s8 = scalar_select 0, %s7, %s5
  $region1: #{tpu_custom_call.1} parent=0
    #allocation2 [shape = 'u8[16384]{0}', space=vmem, size = 0x4000, scoped, tag = 'input window, operand 0']
    #allocation3 [shape = 's32[2]{0}', space=sflag, size = 0x8, scoped, tag = 'scoped memory for tpu_custom_call.1']
    #allocation4 [shape = 's32[2]{0}', space=sflag, size = 0x8, scoped, tag = 'scoped memory for tpu_custom_call.1']
    #allocation5 [shape = 'u8[49152]{0}', space=vmem, size = 0xc000, scoped, tag = 'input window, operand 1, single buffered']
    #allocation6 [shape = 's32[1]{0}', space=sflag, size = 0x4, scoped, tag = 'scoped memory for tpu_custom_call.1']
    #allocation7 [shape = 'u8[16384]{0}', space=vmem, size = 0x4000, scoped, tag = 'input window, operand 2, single buffered']
    #allocation8 [shape = 'u8[118784]{0}', space=vmem, size = 0x1d000, scoped, tag = 'input window, operand 3, single buffered']
    #allocation9 [shape = 's32[1]{0}', space=sflag, size = 0x4, scoped, tag = 'scoped memory for tpu_custom_call.1']
    #allocation10 [shape = 'u8[4096]{0}', space=vmem, size = 0x1000, scoped, tag = 'output window, operand 0']
    %9 = vsyncpa [#allocation3], 0
    %s10 = scalar_lea.sflag [#allocation3], 1
    %11 = vsyncpa %s10, 0
    %12 = vsyncpa [#allocation6], 0
    %13 = vsyncpa [#allocation9], 0
    %14 = vsyncpa [#allocation4], 0
    %s15 = scalar_lea.sflag [#allocation4], 1
    %16 = vsyncpa %s15, 0
    loop: start=0, step=1, limit=4
    $region2: #{tpu_custom_call.1} parent=1 // loop_pre_header
      _
    $region3: #{tpu_custom_call.1} parent=1 // loop_header
      %s18 = sphi 0, %s22
      %p19 = scmp.ge.s32.totalorder %s18, 4
      %s28 = sphi 0, %s30
      %s31 = sphi 0, %s28
      %s32 = sphi 0, %s31
      %s48 = sphi 0, %s32
      %s52 = sphi 0, %s52
      %s54 = sphi 0, %s52
      %s55 = sphi 0, %s54
      %s69 = sphi 0, %s55
      %s73 = sphi 0, %s73
      %s75 = sphi 0, %s73
      %s76 = sphi 0, %s75
      %s90 = sphi 0, %s76
      %s94 = sphi 0, %s94
      %s96 = sphi 0, %s94
      %s97 = sphi 0, %s96
      %s111 = sphi 0, %s97
      %s117 = sphi 0, %s119
      %s120 = sphi 0, %s117
      %s121 = sphi 0, %s120
      %s137 = sphi 0, %s121
    $region4: #{tpu_custom_call.1} parent=1 // loop_header_branch
      %21 = sbr.rel (%p19) target = $region8
    $region5: #{tpu_custom_call.1} parent=1 // loop_body
      %s23 = ssub.s32 %s18, 1
      %s24 = ssub.s32 %s18, 2
      %s25 = sadd.s32 %s18, 1
      %s26 = ssub.s32 %s18, %s25
      %p27 = scmp.eq.s32.totalorder %s26, 0
      %s29 = sadd.s32 %s28, 1
      %s30 = scalar_select %p27, %s28, %s29
      %p33 = pneg %p27
      %p34 = scmp.eq.s32.totalorder %s18, 1
      %p35 = por %p33, %p34
      %p36 = scmp.ne.s32.totalorder %s28, %s31
      %p37 = scmp.eq.s32.totalorder %s18, 0
      %p38 = por %p36, %p37
      %p39 = scmp.ne.s32.totalorder %s28, %s31
      %p40 = scmp.eq.s32.totalorder %s23, 1
      %p41 = por %p39, %p40
      %p42 = scmp.ne.s32.totalorder %s31, %s32
      %p43 = scmp.eq.s32.totalorder %s23, 0
      %p44 = por %p42, %p43
      %p45 = scmp.ne.s32.totalorder %s31, %s32
      %p46 = scmp.eq.s32.totalorder %s24, 1
      %p47 = por %p45, %p46
      %p49 = scmp.ne.s32.totalorder %s32, %s48
      %p50 = scmp.eq.s32.totalorder %s24, 0
      %p51 = por %p49, %p50
      %s53 = sadd.s32 %s52, 1
      %p56 = scmp.eq.s32.totalorder %s18, 1
      %p57 = scmp.ne.s32.totalorder %s52, %s54
      %p58 = scmp.eq.s32.totalorder %s18, 0
      %p59 = por %p57, %p58
      %p60 = scmp.ne.s32.totalorder %s52, %s54
      %p61 = scmp.eq.s32.totalorder %s23, 1
      %p62 = por %p60, %p61
      %p63 = scmp.ne.s32.totalorder %s54, %s55
      %p64 = scmp.eq.s32.totalorder %s23, 0
      %p65 = por %p63, %p64
      %p66 = scmp.ne.s32.totalorder %s54, %s55
      %p67 = scmp.eq.s32.totalorder %s24, 1
      %p68 = por %p66, %p67
      %p70 = scmp.ne.s32.totalorder %s55, %s69
      %p71 = scmp.eq.s32.totalorder %s24, 0
      %p72 = por %p70, %p71
      %s74 = sadd.s32 %s73, 1
      %p77 = scmp.eq.s32.totalorder %s18, 1
      %p78 = scmp.ne.s32.totalorder %s73, %s75
      %p79 = scmp.eq.s32.totalorder %s18, 0
      %p80 = por %p78, %p79
      %p81 = scmp.ne.s32.totalorder %s73, %s75
      %p82 = scmp.eq.s32.totalorder %s23, 1
      %p83 = por %p81, %p82
      %p84 = scmp.ne.s32.totalorder %s75, %s76
      %p85 = scmp.eq.s32.totalorder %s23, 0
      %p86 = por %p84, %p85
      %p87 = scmp.ne.s32.totalorder %s75, %s76
      %p88 = scmp.eq.s32.totalorder %s24, 1
      %p89 = por %p87, %p88
      %p91 = scmp.ne.s32.totalorder %s76, %s90
      %p92 = scmp.eq.s32.totalorder %s24, 0
      %p93 = por %p91, %p92
      %s95 = sadd.s32 %s94, 1
      %p98 = scmp.eq.s32.totalorder %s18, 1
      %p99 = scmp.ne.s32.totalorder %s94, %s96
      %p100 = scmp.eq.s32.totalorder %s18, 0
      %p101 = por %p99, %p100
      %p102 = scmp.ne.s32.totalorder %s94, %s96
      %p103 = scmp.eq.s32.totalorder %s23, 1
      %p104 = por %p102, %p103
      %p105 = scmp.ne.s32.totalorder %s96, %s97
      %p106 = scmp.eq.s32.totalorder %s23, 0
      %p107 = por %p105, %p106
      %p108 = scmp.ne.s32.totalorder %s96, %s97
      %p109 = scmp.eq.s32.totalorder %s24, 1
      %p110 = por %p108, %p109
      %p112 = scmp.ne.s32.totalorder %s97, %s111
      %p113 = scmp.eq.s32.totalorder %s24, 0
      %p114 = por %p112, %p113
      %s115 = ssub.s32 %s18, %s25
      %p116 = scmp.eq.s32.totalorder %s115, 0
      %s118 = sadd.s32 %s117, 1
      %s119 = scalar_select %p116, %s117, %s118
      %p122 = pneg %p116
      %p123 = scmp.eq.s32.totalorder %s18, 1
      %p124 = por %p122, %p123
      %p125 = scmp.ne.s32.totalorder %s117, %s120
      %p126 = scmp.eq.s32.totalorder %s18, 0
      %p127 = por %p125, %p126
      %p128 = scmp.ne.s32.totalorder %s117, %s120
      %p129 = scmp.eq.s32.totalorder %s23, 1
      %p130 = por %p128, %p129
      %p131 = scmp.ne.s32.totalorder %s120, %s121
      %p132 = scmp.eq.s32.totalorder %s23, 0
      %p133 = por %p131, %p132
      %p134 = scmp.ne.s32.totalorder %s120, %s121
      %p135 = scmp.eq.s32.totalorder %s24, 1
      %p136 = por %p134, %p135
      %p138 = scmp.ne.s32.totalorder %s121, %s137
      %p139 = scmp.eq.s32.totalorder %s24, 0
      %p140 = por %p138, %p139
      %p141 = scmp.le.s32.totalorder 1, %s18
      %p142 = scmp.lt.s32.totalorder %s18, 3
      %p143 = pnand %p141, %p142
      %p144 = pneg %p143
      // Predicated region
      $region9: #{tpu_custom_call.1} parent=5 // pred_check
        _
      $region10: #{tpu_custom_call.1} parent=5 // pred_check_branch
        %146 = sbr.rel (%p143) target = $region12
      $region11: #{tpu_custom_call.1} parent=5 // pred_region
        %s147 = ssub.s32 %s18, 1
        // Predicated region
        $region13: #{tpu_custom_call.1} parent=11 // pred_check
          %p148 = pneg %p65
        $region14: #{tpu_custom_call.1} parent=11 // pred_check_branch
          %150 = sbr.rel (%p148) target = $region16
        $region15: #{tpu_custom_call.1} parent=11 // pred_region
          %s152 = ssub.s32 1536, 1536
          %153 = vsyncadd [#allocation6], %s152
          %s154 = sshll.u32 [#allocation5], 4
          %s155 = int_to_ptr.vmem [resolvable:$true] %s154
          %160 = dma.hbm_to_vmem [thread:$0]  %s1, 1536, %s155, [#allocation6], 192, 192, 12
        $region16: #{tpu_custom_call.1} parent=11 // pred_fallthru
          _
        // Predicated region
        $region17: #{tpu_custom_call.1} parent=11 // pred_check
          %p161 = pneg %p86
        $region18: #{tpu_custom_call.1} parent=11 // pred_check_branch
          %163 = sbr.rel (%p161) target = $region20
        $region19: #{tpu_custom_call.1} parent=11 // pred_region
          %s165 = ssub.s32 512, 512
          %166 = vsyncadd [#allocation6], %s165
          %s167 = sshll.u32 [#allocation7], 4
          %s168 = int_to_ptr.vmem [resolvable:$true] %s167
          %173 = dma.hbm_to_vmem [thread:$0]  %s2, 512, %s168, [#allocation6], 128, 128, 8
        $region20: #{tpu_custom_call.1} parent=11 // pred_fallthru
          _
        // Predicated region
        $region21: #{tpu_custom_call.1} parent=11 // pred_check
          %p174 = pneg %p107
        $region22: #{tpu_custom_call.1} parent=11 // pred_check_branch
          %176 = sbr.rel (%p174) target = $region24
        $region23: #{tpu_custom_call.1} parent=11 // pred_region
          %s178 = ssub.s32 3712, 3712
          %179 = vsyncadd [#allocation9], %s178
          %s180 = sshll.u32 [#allocation8], 4
          %s181 = int_to_ptr.vmem [resolvable:$true] %s180
          %186 = dma.hbm_to_vmem [thread:$0]  %s3, 3712, %s181, [#allocation9], 128, 128, 8
        $region24: #{tpu_custom_call.1} parent=11 // pred_fallthru
          _
      $region12: #{tpu_custom_call.1} parent=5 // pred_fallthru
        _
      %p187 = scmp.lt.s32.totalorder %s18, 2
      // Predicated region
      $region25: #{tpu_custom_call.1} parent=5 // pred_check
        %p188 = pneg %p187
      $region26: #{tpu_custom_call.1} parent=5 // pred_check_branch
        %190 = sbr.rel (%p188) target = $region28
      $region27: #{tpu_custom_call.1} parent=5 // pred_region
        // Predicated region
        $region29: #{tpu_custom_call.1} parent=27 // pred_check
          %p191 = pneg %p38
        $region30: #{tpu_custom_call.1} parent=27 // pred_check_branch
          %193 = sbr.rel (%p191) target = $region32
        $region31: #{tpu_custom_call.1} parent=27 // pred_region
          %s194 = sand.u32 %s28, 1
          %s195 = scalar_lea.sflag [#allocation3], %s194
          %s196 = sand.u32 %s28, 1
          %s197 = smul.addr %s196, 16
          %s198 = scalar_lea.vmem [#allocation2], %s197
          %s200 = ssub.s32 256, 256
          %201 = vsyncadd %s195, %s200
          %s202 = smul.addr %s18, 4
          %s203 = smul.addr %s202, 64
          %s204 = scalar_lea.hbm %s0, %s203
          %s205 = sshll.u32 %s198, 4
          %s206 = int_to_ptr.vmem [resolvable:$true] %s205
          %211 = dma.hbm_to_vmem [thread:$0]  %s204, 256, %s206, %s195, 64, 64, 4
        $region32: #{tpu_custom_call.1} parent=27 // pred_fallthru
          _
      $region28: #{tpu_custom_call.1} parent=5 // pred_fallthru
        _
      %p212 = scmp.le.s32.totalorder 1, %s18
      %p213 = scmp.lt.s32.totalorder %s18, 3
      %p214 = pnand %p212, %p213
      %p215 = pneg %p214
      // Predicated region
      $region33: #{tpu_custom_call.1} parent=5 // pred_check
        _
      $region34: #{tpu_custom_call.1} parent=5 // pred_check_branch
        %217 = sbr.rel (%p214) target = $region36
      $region35: #{tpu_custom_call.1} parent=5 // pred_region
        %s218 = ssub.s32 %s18, 1
        %s219 = sand.u32 %s31, 1
        %s220 = scalar_lea.sflag [#allocation3], %s219
        %s221 = sand.u32 %s31, 1
        %s222 = smul.addr %s221, 16
        %s223 = scalar_lea.vmem [#allocation2], %s222
        // Predicated region
        $region37: #{tpu_custom_call.1} parent=35 // pred_check
          %p224 = pneg %p44
        $region38: #{tpu_custom_call.1} parent=35 // pred_check_branch
          %226 = sbr.rel (%p224) target = $region40
        $region39: #{tpu_custom_call.1} parent=35 // pred_region
          %227 = dma.done %s220, 256
        $region40: #{tpu_custom_call.1} parent=35 // pred_fallthru
          _
        // Predicated region
        $region41: #{tpu_custom_call.1} parent=35 // pred_check
          %p228 = pneg %p65
        $region42: #{tpu_custom_call.1} parent=35 // pred_check_branch
          %230 = sbr.rel (%p228) target = $region44
        $region43: #{tpu_custom_call.1} parent=35 // pred_region
          %231 = dma.done [#allocation6], 1536
        $region44: #{tpu_custom_call.1} parent=35 // pred_fallthru
          _
        // Predicated region
        $region45: #{tpu_custom_call.1} parent=35 // pred_check
          %p232 = pneg %p86
        $region46: #{tpu_custom_call.1} parent=35 // pred_check_branch
          %234 = sbr.rel (%p232) target = $region48
        $region47: #{tpu_custom_call.1} parent=35 // pred_region
          %235 = dma.done [#allocation6], 512
        $region48: #{tpu_custom_call.1} parent=35 // pred_fallthru
          _
        // Predicated region
        $region49: #{tpu_custom_call.1} parent=35 // pred_check
          %p236 = pneg %p107
        $region50: #{tpu_custom_call.1} parent=35 // pred_check_branch
          %238 = sbr.rel (%p236) target = $region52
        $region51: #{tpu_custom_call.1} parent=35 // pred_region
          %239 = dma.done [#allocation9], 3712
        $region52: #{tpu_custom_call.1} parent=35 // pred_fallthru
          _
        %s240 = sand.u32 %s31, 1
        %s241 = scalar_lea.sflag [#allocation3], %s240
        %s242 = sand.u32 %s31, 1
        %s243 = smul.addr %s242, 16
        %s244 = scalar_lea.vmem [#allocation2], %s243
        %p245 = pneg %p44
        %p246 = pneg %p41
        %p247 = pneg %p65
        %p248 = pneg %p62
        %p249 = pneg %p86
        %p250 = pneg %p83
        %p251 = pneg %p107
        %p252 = pneg %p104
        %p253 = pneg %p133
        %p254 = pneg %p130
        %s255 = sand.u32 %s120, 1
        %s256 = scalar_lea.sflag [#allocation4], %s255
        %s257 = sand.u32 %s120, 1
        %s258 = smul.addr %s257, 4
        %s259 = scalar_lea.vmem [#allocation10], %s258
        %v261 = vld [vmem:[#allocation7] sm:$0xff]
        %v262 = vld [vmem:[#allocation7 + $0x8] sm:$0xff]
        %v263 = vld [vmem:[#allocation7 + $0x10] sm:$0xff]
        %v264 = vld [vmem:[#allocation7 + $0x18] sm:$0xff]
        %v265 = vld [vmem:[#allocation8 + $0x20] sm:$0x1]
        %v266 = vld [vmem:[#allocation8 + $0x21] sm:$0x1]
        %v267 = vld [vmem:[#allocation8 + $0x22] sm:$0x1]
        %v268 = vld [vmem:[#allocation8 + $0x23] sm:$0x1]
        %v269 = vld [vmem:[%s223] sm:$0xf]
        %v270 = vld [vmem:[%s223 + $0x4] sm:$0xf]
        %v271 = vld [vmem:[%s223 + $0x8] sm:$0xf]
        %v272 = vld [vmem:[%s223 + $0xc] sm:$0xf]
        %v273 = vlaneseq
        %v274 = vshrl.u32 %v273, 7
        %v275 = vsub.s32 0, %v274
        %v276 = vrot.slane %v265, %v275
        %v281 = vunpack.c.l.b16 %v269
        %v282 = vunpack.c.l.b16 %v270
        %v283 = vunpack.c.l.b16 %v271
        %v284 = vunpack.c.l.b16 %v272
        %v285 = vpack.c.b16 %v282, %v281
        %v286 = vpack.c.b16 %v284, %v283
        %v291 = vunpack.c.l.b16 %v261
        %v292 = vunpack.c.l.b16 %v262
        %v293 = vunpack.c.l.b16 %v263
        %v294 = vunpack.c.l.b16 %v264
        %v295 = vpack.c.b16 %v292, %v291
        %v296 = vpack.c.b16 %v294, %v293
        %vm299 = vcmask 261120
        %v301 = vsel %vm299, %v285, 0
        %v304 = vsel %vm299, %v286, 0
        %306 = vmatprep.subr.bf16.mxu0 0
        %307 = vmatpush1.bf16.msra.mxu0 0
        %308 = vmatprep.subr.bf16.mxu0 0
        %309 = vmatpush1.bf16.msra.mxu0 0
        %310 = vmatprep.subr.bf16.mxu0 0
        %311 = vmatpush1.bf16.msra.mxu0 0
        %312 = vmatprep.subr.bf16.mxu0 0
        %313 = vmatpush1.bf16.msra.mxu0 0
        %314 = vmatprep.subr.bf16.mxu0 0
        %315 = vmatpush1.bf16.msra.mxu0 0
        %316 = vmatprep.subr.bf16.mxu0 0
        %317 = vmatpush1.bf16.msra.mxu0 0
        %318 = vmatprep.subr.bf16.mxu0 0
        %319 = vmatpush1.bf16.msra.mxu0 %v296
        %320 = vmatprep.subr.bf16.mxu0 0
        %321 = vmatpush1.bf16.msra.mxu0 %v295
        %322 = vmatprep.subr.bf16.mxu0 0
        %323 = vmatpush2.bf16.msra.mxu0 0
        %324 = vmatprep.subr.bf16.mxu0 0
        %325 = vmatpush2.bf16.msra.mxu0 0
        %326 = vmatprep.subr.bf16.mxu0 0
        %327 = vmatpush2.bf16.msra.mxu0 0
        %328 = vmatprep.subr.bf16.mxu0 0
        %329 = vmatpush2.bf16.msra.mxu0 0
        %330 = vmatprep.subr.bf16.mxu0 0
        %331 = vmatpush2.bf16.msra.mxu0 0
        %332 = vmatprep.subr.bf16.mxu0 0
        %333 = vmatpush2.bf16.msra.mxu0 0
        %334 = vmatprep.subr.bf16.mxu0 0
        %335 = vmatpush2.bf16.msra.mxu0 0
        %336 = vmatprep.subr.bf16.mxu0 0
        %337 = vmatpush2.bf16.msra.mxu0 0
        %338 = vmatprep.mubr.bf16.mxu0 0
        %339 = vmatmul.mubr.bf16.gmra.mxu0 %v301
        %v340 = vpop.f32.mrf.mxu0
        %v341 = vadd.f32 %v276, %v340
        %v342 = vpop.f32.mrf.mxu0
        %v343 = vpop.f32.mrf.mxu0
        %v344 = vadd.f32 %v276, %v343
        %v345 = vpop.f32.mrf.mxu0
        %346 = vmatprep.mubr.bf16.mxu0 0
        %347 = vmatmul.mubr.bf16.gmra.mxu0 %v304
        %v348 = vpop.f32.mrf.mxu0
        %v349 = vadd.f32 %v276, %v348
        %v350 = vpop.f32.mrf.mxu0
        %v351 = vpop.f32.mrf.mxu0
        %v352 = vadd.f32 %v276, %v351
        %v353 = vpop.f32.mrf.mxu0
        %354 = vdwg.mxu0
        %vm355 = vcmp.ge.f32.partialorder %v341, 0.0
        %vm356 = vcmp.ge.f32.partialorder %v344, 0.0
        %vm357 = vcmp.ge.f32.partialorder %v349, 0.0
        %vm358 = vcmp.ge.f32.partialorder %v352, 0.0
        %v359 = vmul.f32 %v341, 0.2
        %v360 = vmul.f32 %v344, 0.2
        %v361 = vmul.f32 %v349, 0.2
        %v362 = vmul.f32 %v352, 0.2
        %v363 = vsel %vm355, %v341, %v359
        %v364 = vsel %vm356, %v344, %v360
        %v365 = vsel %vm357, %v349, %v361
        %v366 = vsel %vm358, %v352, %v362
        %v367 = vpack.c.bf16 %v364, %v363
        %v368 = vpack.c.bf16 %v366, %v365
        %v369 = vlaneseq
        %v370 = vshrl.u32 %v369, 7
        %v371 = vsub.s32 0, %v370
        %v372 = vrot.slane %v266, %v371
        %373 = vrot.lane.b32.xlu0 %v295, 96
        %v374 = vpop.permute.xlu0 %373
        %375 = vrot.lane.b32.xlu0 %v296, 96
        %v376 = vpop.permute.xlu0 %375
        %v380 = vsel %vm299, %v367, 0
        %v383 = vsel %vm299, %v368, 0
        %385 = vmatprep.subr.bf16.mxu0 0
        %386 = vmatpush1.bf16.msra.mxu0 0
        %387 = vmatprep.subr.bf16.mxu0 0
        %388 = vmatpush1.bf16.msra.mxu0 0
        %389 = vmatprep.subr.bf16.mxu0 0
        %390 = vmatpush1.bf16.msra.mxu0 0
        %391 = vmatprep.subr.bf16.mxu0 0
        %392 = vmatpush1.bf16.msra.mxu0 0
        %393 = vmatprep.subr.bf16.mxu0 0
        %394 = vmatpush1.bf16.msra.mxu0 0
        %395 = vmatprep.subr.bf16.mxu0 0
        %396 = vmatpush1.bf16.msra.mxu0 0
        %397 = vmatprep.subr.bf16.mxu0 0
        %398 = vmatpush1.bf16.msra.mxu0 %v376
        %399 = vmatprep.subr.bf16.mxu0 0
        %400 = vmatpush1.bf16.msra.mxu0 %v374
        %401 = vmatprep.subr.bf16.mxu0 0
        %402 = vmatpush2.bf16.msra.mxu0 0
        %403 = vmatprep.subr.bf16.mxu0 0
        %404 = vmatpush2.bf16.msra.mxu0 0
        %405 = vmatprep.subr.bf16.mxu0 0
        %406 = vmatpush2.bf16.msra.mxu0 0
        %407 = vmatprep.subr.bf16.mxu0 0
        %408 = vmatpush2.bf16.msra.mxu0 0
        %409 = vmatprep.subr.bf16.mxu0 0
        %410 = vmatpush2.bf16.msra.mxu0 0
        %411 = vmatprep.subr.bf16.mxu0 0
        %412 = vmatpush2.bf16.msra.mxu0 0
        %413 = vmatprep.subr.bf16.mxu0 0
        %414 = vmatpush2.bf16.msra.mxu0 0
        %415 = vmatprep.subr.bf16.mxu0 0
        %416 = vmatpush2.bf16.msra.mxu0 0
        %417 = vmatprep.mubr.bf16.mxu0 0
        %418 = vmatmul.mubr.bf16.gmra.mxu0 %v380
        %v419 = vpop.f32.mrf.mxu0
        %v420 = vadd.f32 %v372, %v419
        %v421 = vpop.f32.mrf.mxu0
        %v422 = vpop.f32.mrf.mxu0
        %v423 = vadd.f32 %v372, %v422
        %v424 = vpop.f32.mrf.mxu0
        %425 = vmatprep.mubr.bf16.mxu0 0
        %426 = vmatmul.mubr.bf16.gmra.mxu0 %v383
        %v427 = vpop.f32.mrf.mxu0
        %v428 = vadd.f32 %v372, %v427
        %v429 = vpop.f32.mrf.mxu0
        %v430 = vpop.f32.mrf.mxu0
        %v431 = vadd.f32 %v372, %v430
        %v432 = vpop.f32.mrf.mxu0
        %433 = vdwg.mxu0
        %vm434 = vcmp.ge.f32.partialorder %v420, 0.0
        %vm435 = vcmp.ge.f32.partialorder %v423, 0.0
        %vm436 = vcmp.ge.f32.partialorder %v428, 0.0
        %vm437 = vcmp.ge.f32.partialorder %v431, 0.0
        %v438 = vmul.f32 %v420, 0.2
        %v439 = vmul.f32 %v423, 0.2
        %v440 = vmul.f32 %v428, 0.2
        %v441 = vmul.f32 %v431, 0.2
        %v442 = vsel %vm434, %v420, %v438
        %v443 = vsel %vm435, %v423, %v439
        %v444 = vsel %vm436, %v428, %v440
        %v445 = vsel %vm437, %v431, %v441
        %v446 = vpack.c.bf16 %v443, %v442
        %v447 = vpack.c.bf16 %v445, %v444
        %448 = vrot.lane.b32.xlu0 %v295, 32
        %v449 = vpop.permute.xlu0 %448
        %450 = vrot.lane.b32.xlu0 %v296, 32
        %v451 = vpop.permute.xlu0 %450
        %v453 = vsel %vm299, %v449, 0
        %v456 = vsel %vm299, %v451, 0
        %458 = vmatprep.subr.bf16.mxu0 0
        %459 = vmatpush1.bf16.msra.mxu0 0
        %460 = vmatprep.subr.bf16.mxu0 0
        %461 = vmatpush1.bf16.msra.mxu0 0
        %462 = vmatprep.subr.bf16.mxu0 0
        %463 = vmatpush1.bf16.msra.mxu0 0
        %464 = vmatprep.subr.bf16.mxu0 0
        %465 = vmatpush1.bf16.msra.mxu0 0
        %466 = vmatprep.subr.bf16.mxu0 0
        %467 = vmatpush1.bf16.msra.mxu0 0
        %468 = vmatprep.subr.bf16.mxu0 0
        %469 = vmatpush1.bf16.msra.mxu0 0
        %470 = vmatprep.subr.bf16.mxu0 0
        %471 = vmatpush1.bf16.msra.mxu0 %v447
        %472 = vmatprep.subr.bf16.mxu0 0
        %473 = vmatpush1.bf16.msra.mxu0 %v446
        %474 = vmatprep.subr.bf16.mxu0 0
        %475 = vmatpush2.bf16.msra.mxu0 0
        %476 = vmatprep.subr.bf16.mxu0 0
        %477 = vmatpush2.bf16.msra.mxu0 0
        %478 = vmatprep.subr.bf16.mxu0 0
        %479 = vmatpush2.bf16.msra.mxu0 0
        %480 = vmatprep.subr.bf16.mxu0 0
        %481 = vmatpush2.bf16.msra.mxu0 0
        %482 = vmatprep.subr.bf16.mxu0 0
        %483 = vmatpush2.bf16.msra.mxu0 0
        %484 = vmatprep.subr.bf16.mxu0 0
        %485 = vmatpush2.bf16.msra.mxu0 0
        %486 = vmatprep.subr.bf16.mxu0 0
        %487 = vmatpush2.bf16.msra.mxu0 0
        %488 = vmatprep.subr.bf16.mxu0 0
        %489 = vmatpush2.bf16.msra.mxu0 0
        %490 = vmatprep.mubr.bf16.mxu0 0
        %491 = vmatmul.mubr.bf16.gmra.mxu0 %v453
        %v492 = vpop.f32.mrf.mxu0
        %v493 = vadd.f32 0.0, %v492
        %v494 = vpop.f32.mrf.mxu0
        %v495 = vpop.f32.mrf.mxu0
        %v496 = vadd.f32 0.0, %v495
        %v497 = vpop.f32.mrf.mxu0
        %498 = vmatprep.mubr.bf16.mxu0 0
        %499 = vmatmul.mubr.bf16.gmra.mxu0 %v456
        %v500 = vpop.f32.mrf.mxu0
        %v501 = vadd.f32 0.0, %v500
        %v502 = vpop.f32.mrf.mxu0
        %v503 = vpop.f32.mrf.mxu0
        %v504 = vadd.f32 0.0, %v503
        %v505 = vpop.f32.mrf.mxu0
        %506 = vdwg.mxu0
        %v507 = vpack.c.bf16 %v496, %v493
        %v508 = vpack.c.bf16 %v504, %v501
        %v509 = vlaneseq
        %v510 = vshrl.u32 %v509, 7
        %v511 = vsub.s32 0, %v510
        %v512 = vrot.slane %v267, %v511
        %513 = vrot.lane.b32.xlu0 %v295, 64
        %v514 = vpop.permute.xlu0 %513
        %515 = vrot.lane.b32.xlu0 %v296, 64
        %v516 = vpop.permute.xlu0 %515
        %v520 = vsel %vm299, %v507, 0
        %v523 = vsel %vm299, %v508, 0
        %525 = vmatprep.subr.bf16.mxu0 0
        %526 = vmatpush1.bf16.msra.mxu0 0
        %527 = vmatprep.subr.bf16.mxu0 0
        %528 = vmatpush1.bf16.msra.mxu0 0
        %529 = vmatprep.subr.bf16.mxu0 0
        %530 = vmatpush1.bf16.msra.mxu0 0
        %531 = vmatprep.subr.bf16.mxu0 0
        %532 = vmatpush1.bf16.msra.mxu0 0
        %533 = vmatprep.subr.bf16.mxu0 0
        %534 = vmatpush1.bf16.msra.mxu0 0
        %535 = vmatprep.subr.bf16.mxu0 0
        %536 = vmatpush1.bf16.msra.mxu0 0
        %537 = vmatprep.subr.bf16.mxu0 0
        %538 = vmatpush1.bf16.msra.mxu0 %v516
        %539 = vmatprep.subr.bf16.mxu0 0
        %540 = vmatpush1.bf16.msra.mxu0 %v514
        %541 = vmatprep.subr.bf16.mxu0 0
        %542 = vmatpush2.bf16.msra.mxu0 0
        %543 = vmatprep.subr.bf16.mxu0 0
        %544 = vmatpush2.bf16.msra.mxu0 0
        %545 = vmatprep.subr.bf16.mxu0 0
        %546 = vmatpush2.bf16.msra.mxu0 0
        %547 = vmatprep.subr.bf16.mxu0 0
        %548 = vmatpush2.bf16.msra.mxu0 0
        %549 = vmatprep.subr.bf16.mxu0 0
        %550 = vmatpush2.bf16.msra.mxu0 0
        %551 = vmatprep.subr.bf16.mxu0 0
        %552 = vmatpush2.bf16.msra.mxu0 0
        %553 = vmatprep.subr.bf16.mxu0 0
        %554 = vmatpush2.bf16.msra.mxu0 0
        %555 = vmatprep.subr.bf16.mxu0 0
        %556 = vmatpush2.bf16.msra.mxu0 0
        %557 = vmatprep.mubr.bf16.mxu0 0
        %558 = vmatmul.mubr.bf16.gmra.mxu0 %v520
        %v559 = vpop.f32.mrf.mxu0
        %v560 = vadd.f32 %v512, %v559
        %v561 = vpop.f32.mrf.mxu0
        %v562 = vpop.f32.mrf.mxu0
        %v563 = vadd.f32 %v512, %v562
        %v564 = vpop.f32.mrf.mxu0
        %565 = vmatprep.mubr.bf16.mxu0 0
        %566 = vmatmul.mubr.bf16.gmra.mxu0 %v523
        %v567 = vpop.f32.mrf.mxu0
        %v568 = vadd.f32 %v512, %v567
        %v569 = vpop.f32.mrf.mxu0
        %v570 = vpop.f32.mrf.mxu0
        %v571 = vadd.f32 %v512, %v570
        %v572 = vpop.f32.mrf.mxu0
        %573 = vdwg.mxu0
        %vm574 = vcmp.ge.f32.partialorder %v560, 0.0
        %vm575 = vcmp.ge.f32.partialorder %v563, 0.0
        %vm576 = vcmp.ge.f32.partialorder %v568, 0.0
        %vm577 = vcmp.ge.f32.partialorder %v571, 0.0
        %v578 = vmul.f32 %v560, 0.2
        %v579 = vmul.f32 %v563, 0.2
        %v580 = vmul.f32 %v568, 0.2
        %v581 = vmul.f32 %v571, 0.2
        %v582 = vsel %vm574, %v560, %v578
        %v583 = vsel %vm575, %v563, %v579
        %v584 = vsel %vm576, %v568, %v580
        %v585 = vsel %vm577, %v571, %v581
        %v586 = vld [vmem:[#allocation8] sm:$0xff]
        %v587 = vld [vmem:[#allocation8 + $0x8] sm:$0xff]
        %v588 = vld [vmem:[#allocation8 + $0x10] sm:$0xff]
        %v589 = vld [vmem:[#allocation8 + $0x18] sm:$0xff]
        %v590 = vadd.f32 %v582, %v586
        %v591 = vadd.f32 %v583, %v587
        %v592 = vadd.f32 %v584, %v588
        %v593 = vadd.f32 %v585, %v589
        %v594 = vld [vmem:[#allocation8 + $0x68] sm:$0xff]
        %v595 = vld [vmem:[#allocation8 + $0x70] sm:$0xff]
        %v596 = vld [vmem:[#allocation8 + $0x78] sm:$0xff]
        %v597 = vld [vmem:[#allocation8 + $0x80] sm:$0xff]
        %v598 = vld [vmem:[#allocation8 + $0x88] sm:$0xff]
        %v599 = vld [vmem:[#allocation8 + $0x90] sm:$0xff]
        %v600 = vld [vmem:[#allocation8 + $0x98] sm:$0xff]
        %v601 = vld [vmem:[#allocation8 + $0xa0] sm:$0xff]
        %v602 = vld [vmem:[#allocation8 + $0xa8] sm:$0xff]
        %v603 = vld [vmem:[#allocation8 + $0xb0] sm:$0xff]
        %v604 = vld [vmem:[#allocation8 + $0xb8] sm:$0xff]
        %v605 = vld [vmem:[#allocation8 + $0xc0] sm:$0xff]
        %v606 = vld [vmem:[#allocation8 + $0xc8] sm:$0xff]
        %v607 = vld [vmem:[#allocation8 + $0xd0] sm:$0xff]
        %v608 = vld [vmem:[#allocation8 + $0xd8] sm:$0xff]
        %v609 = vld [vmem:[#allocation8 + $0xe0] sm:$0xff]
        %v610 = vpack.c.bf16 %v595, %v594
        %v611 = vpack.c.bf16 %v597, %v596
        %v612 = vpack.c.bf16 %v599, %v598
        %v613 = vpack.c.bf16 %v601, %v600
        %v614 = vpack.c.bf16 %v603, %v602
        %v615 = vpack.c.bf16 %v605, %v604
        %v616 = vpack.c.bf16 %v607, %v606
        %v617 = vpack.c.bf16 %v609, %v608
        %v618 = vld [vmem:[#allocation8 + $0x40] sm:$0xff]
        %v619 = vld [vmem:[#allocation8 + $0x48] sm:$0xff]
        %v620 = vld [vmem:[#allocation8 + $0x50] sm:$0xff]
        %v621 = vld [vmem:[#allocation8 + $0x58] sm:$0xff]
        %v622 = vld [vmem:[#allocation8 + $0x60] sm:$0xf]
        %v623 = vld [vmem:[#allocation8 + $0x28] sm:$0xf]
        %v624 = vld [vmem:[#allocation5] sm:$0xff]
        %v625 = vld [vmem:[#allocation5 + $0x8] sm:$0xf]
        %v626 = vld [vmem:[#allocation5 + $0xc] sm:$0xff]
        %v627 = vld [vmem:[#allocation5 + $0x14] sm:$0xf]
        %v628 = vld [vmem:[#allocation5 + $0x18] sm:$0xff]
        %v629 = vld [vmem:[#allocation5 + $0x20] sm:$0xf]
        %v630 = vld [vmem:[#allocation5 + $0x24] sm:$0xff]
        %v631 = vld [vmem:[#allocation5 + $0x2c] sm:$0xf]
        %v632 = vld [vmem:[#allocation8 + $0x30] sm:$0x1]
        %v633 = vld [vmem:[#allocation8 + $0x31] sm:$0x1]
        %v634 = vld [vmem:[#allocation8 + $0x32] sm:$0x1]
        %v635 = vld [vmem:[#allocation8 + $0x33] sm:$0x1]
        %v636 = vld [vmem:[#allocation8 + $0x34] sm:$0x1]
        %v637 = vld [vmem:[#allocation8 + $0x35] sm:$0x1]
        %v638 = vld [vmem:[#allocation8 + $0x36] sm:$0x1]
        %v639 = vld [vmem:[#allocation8 + $0x37] sm:$0x1]
        %v640 = vpack.c.bf16 %v591, %v590
        %v641 = vpack.c.bf16 %v593, %v592
        %v642 = vlaneseq
        %v643 = vshrl.u32 %v642, 7
        %v644 = vsub.s32 0, %v643
        %v645 = vrot.slane %v632, %v644
        %v650 = vunpack.c.l.b16 %v624
        %v651 = vunpack.c.l.b16 %v626
        %v652 = vunpack.c.l.b16 %v628
        %v653 = vunpack.c.l.b16 %v630
        %v654 = vpack.c.b16 %v651, %v650
        %v655 = vpack.c.b16 %v653, %v652
        %v659 = vsel %vm299, %v640, 0
        %v662 = vsel %vm299, %v641, 0
        %664 = vmatprep.subr.bf16.mxu0 0
        %665 = vmatpush1.bf16.msra.mxu0 0
        %666 = vmatprep.subr.bf16.mxu0 0
        %667 = vmatpush1.bf16.msra.mxu0 0
        %668 = vmatprep.subr.bf16.mxu0 0
        %669 = vmatpush1.bf16.msra.mxu0 0
        %670 = vmatprep.subr.bf16.mxu0 0
        %671 = vmatpush1.bf16.msra.mxu0 0
        %672 = vmatprep.subr.bf16.mxu0 0
        %673 = vmatpush1.bf16.msra.mxu0 0
        %674 = vmatprep.subr.bf16.mxu0 0
        %675 = vmatpush1.bf16.msra.mxu0 0
        %676 = vmatprep.subr.bf16.mxu0 0
        %677 = vmatpush1.bf16.msra.mxu0 %v655
        %678 = vmatprep.subr.bf16.mxu0 0
        %679 = vmatpush1.bf16.msra.mxu0 %v654
        %680 = vmatprep.subr.bf16.mxu0 0
        %681 = vmatpush2.bf16.msra.mxu0 0
        %682 = vmatprep.subr.bf16.mxu0 0
        %683 = vmatpush2.bf16.msra.mxu0 0
        %684 = vmatprep.subr.bf16.mxu0 0
        %685 = vmatpush2.bf16.msra.mxu0 0
        %686 = vmatprep.subr.bf16.mxu0 0
        %687 = vmatpush2.bf16.msra.mxu0 0
        %688 = vmatprep.subr.bf16.mxu0 0
        %689 = vmatpush2.bf16.msra.mxu0 0
        %690 = vmatprep.subr.bf16.mxu0 0
        %691 = vmatpush2.bf16.msra.mxu0 0
        %692 = vmatprep.subr.bf16.mxu0 0
        %693 = vmatpush2.bf16.msra.mxu0 0
        %694 = vmatprep.subr.bf16.mxu0 0
        %695 = vmatpush2.bf16.msra.mxu0 0
        %696 = vmatprep.mubr.bf16.mxu0 0
        %697 = vmatmul.mubr.bf16.gmra.mxu0 %v659
        %v698 = vpop.f32.mrf.mxu0
        %v699 = vadd.f32 %v645, %v698
        %v700 = vpop.f32.mrf.mxu0
        %v701 = vpop.f32.mrf.mxu0
        %v702 = vadd.f32 %v645, %v701
        %v703 = vpop.f32.mrf.mxu0
        %704 = vmatprep.mubr.bf16.mxu0 0
        %705 = vmatmul.mubr.bf16.gmra.mxu0 %v662
        %v706 = vpop.f32.mrf.mxu0
        %v707 = vadd.f32 %v645, %v706
        %v708 = vpop.f32.mrf.mxu0
        %v709 = vpop.f32.mrf.mxu0
        %v710 = vadd.f32 %v645, %v709
        %v711 = vpop.f32.mrf.mxu0
        %712 = vdwg.mxu0
        %729 = vrot.lane.b32.xlu0 %v594, 32
        %v730 = vpop.permute.xlu0 %729
        %731 = vrot.lane.b32.xlu0 %v595, 32
        %v732 = vpop.permute.xlu0 %731
        %733 = vrot.lane.b32.xlu0 %v596, 32
        %v734 = vpop.permute.xlu0 %733
        %735 = vrot.lane.b32.xlu0 %v597, 32
        %v736 = vpop.permute.xlu0 %735
        %737 = vrot.lane.b32.xlu0 %v598, 32
        %v738 = vpop.permute.xlu0 %737
        %739 = vrot.lane.b32.xlu0 %v599, 32
        %v740 = vpop.permute.xlu0 %739
        %741 = vrot.lane.b32.xlu0 %v600, 32
        %v742 = vpop.permute.xlu0 %741
        %743 = vrot.lane.b32.xlu0 %v601, 32
        %v744 = vpop.permute.xlu0 %743
        %745 = vrot.lane.b32.xlu0 %v602, 32
        %v746 = vpop.permute.xlu0 %745
        %747 = vrot.lane.b32.xlu0 %v603, 32
        %v748 = vpop.permute.xlu0 %747
        %749 = vrot.lane.b32.xlu0 %v604, 32
        %v750 = vpop.permute.xlu0 %749
        %751 = vrot.lane.b32.xlu0 %v605, 32
        %v752 = vpop.permute.xlu0 %751
        %753 = vrot.lane.b32.xlu0 %v606, 32
        %v754 = vpop.permute.xlu0 %753
        %755 = vrot.lane.b32.xlu0 %v607, 32
        %v756 = vpop.permute.xlu0 %755
        %757 = vrot.lane.b32.xlu0 %v608, 32
        %v758 = vpop.permute.xlu0 %757
        %759 = vrot.lane.b32.xlu0 %v609, 32
        %v760 = vpop.permute.xlu0 %759
        %v777 = vmul.f32 %v699, %v730
        %v778 = vmul.f32 %v702, %v732
        %v779 = vmul.f32 %v707, %v734
        %v780 = vmul.f32 %v710, %v736
        %v781 = vmul.f32 %v699, %v738
        %v782 = vmul.f32 %v702, %v740
        %v783 = vmul.f32 %v707, %v742
        %v784 = vmul.f32 %v710, %v744
        %v785 = vmul.f32 %v699, %v746
        %v786 = vmul.f32 %v702, %v748
        %v787 = vmul.f32 %v707, %v750
        %v788 = vmul.f32 %v710, %v752
        %v789 = vmul.f32 %v699, %v754
        %v790 = vmul.f32 %v702, %v756
        %v791 = vmul.f32 %v707, %v758
        %v792 = vmul.f32 %v710, %v760
        %v793 = vpack.c.bf16 %v778, %v777
        %v794 = vpack.c.bf16 %v780, %v779
        %v795 = vpack.c.bf16 %v782, %v781
        %v796 = vpack.c.bf16 %v784, %v783
        %v797 = vpack.c.bf16 %v786, %v785
        %v798 = vpack.c.bf16 %v788, %v787
        %v799 = vpack.c.bf16 %v790, %v789
        %v800 = vpack.c.bf16 %v792, %v791
        %801 = vrot.lane.b32.xlu0 %v594, 64
        %v802 = vpop.permute.xlu0 %801
        %803 = vrot.lane.b32.xlu0 %v595, 64
        %v804 = vpop.permute.xlu0 %803
        %805 = vrot.lane.b32.xlu0 %v596, 64
        %v806 = vpop.permute.xlu0 %805
        %807 = vrot.lane.b32.xlu0 %v597, 64
        %v808 = vpop.permute.xlu0 %807
        %809 = vrot.lane.b32.xlu0 %v598, 64
        %v810 = vpop.permute.xlu0 %809
        %811 = vrot.lane.b32.xlu0 %v599, 64
        %v812 = vpop.permute.xlu0 %811
        %813 = vrot.lane.b32.xlu0 %v600, 64
        %v814 = vpop.permute.xlu0 %813
        %815 = vrot.lane.b32.xlu0 %v601, 64
        %v816 = vpop.permute.xlu0 %815
        %817 = vrot.lane.b32.xlu0 %v602, 64
        %v818 = vpop.permute.xlu0 %817
        %819 = vrot.lane.b32.xlu0 %v603, 64
        %v820 = vpop.permute.xlu0 %819
        %821 = vrot.lane.b32.xlu0 %v604, 64
        %v822 = vpop.permute.xlu0 %821
        %823 = vrot.lane.b32.xlu0 %v605, 64
        %v824 = vpop.permute.xlu0 %823
        %825 = vrot.lane.b32.xlu0 %v606, 64
        %v826 = vpop.permute.xlu0 %825
        %827 = vrot.lane.b32.xlu0 %v607, 64
        %v828 = vpop.permute.xlu0 %827
        %829 = vrot.lane.b32.xlu0 %v608, 64
        %v830 = vpop.permute.xlu0 %829
        %831 = vrot.lane.b32.xlu0 %v609, 64
        %v832 = vpop.permute.xlu0 %831
        %v849 = vmul.f32 %v699, %v802
        %v850 = vmul.f32 %v702, %v804
        %v851 = vmul.f32 %v707, %v806
        %v852 = vmul.f32 %v710, %v808
        %v853 = vmul.f32 %v699, %v810
        %v854 = vmul.f32 %v702, %v812
        %v855 = vmul.f32 %v707, %v814
        %v856 = vmul.f32 %v710, %v816
        %v857 = vmul.f32 %v699, %v818
        %v858 = vmul.f32 %v702, %v820
        %v859 = vmul.f32 %v707, %v822
        %v860 = vmul.f32 %v710, %v824
        %v861 = vmul.f32 %v699, %v826
        %v862 = vmul.f32 %v702, %v828
        %v863 = vmul.f32 %v707, %v830
        %v864 = vmul.f32 %v710, %v832
        %v865 = vpack.c.bf16 %v850, %v849
        %v866 = vpack.c.bf16 %v852, %v851
        %v867 = vpack.c.bf16 %v854, %v853
        %v868 = vpack.c.bf16 %v856, %v855
        %v869 = vpack.c.bf16 %v858, %v857
        %v870 = vpack.c.bf16 %v860, %v859
        %v871 = vpack.c.bf16 %v862, %v861
        %v872 = vpack.c.bf16 %v864, %v863
        %881 = vrot.lane.b32.xlu0 %v865, 64
        %v882 = vpop.permute.xlu0 %881
        %883 = vrot.lane.b32.xlu0 %v866, 64
        %v884 = vpop.permute.xlu0 %883
        %885 = vrot.lane.b32.xlu0 %v867, 64
        %v886 = vpop.permute.xlu0 %885
        %887 = vrot.lane.b32.xlu0 %v868, 64
        %v888 = vpop.permute.xlu0 %887
        %889 = vrot.lane.b32.xlu0 %v869, 64
        %v890 = vpop.permute.xlu0 %889
        %891 = vrot.lane.b32.xlu0 %v870, 64
        %v892 = vpop.permute.xlu0 %891
        %893 = vrot.lane.b32.xlu0 %v871, 64
        %v894 = vpop.permute.xlu0 %893
        %895 = vrot.lane.b32.xlu0 %v872, 64
        %v896 = vpop.permute.xlu0 %895
        %905 = vrot.lane.b32.xlu0 %v610, 32
        %v906 = vpop.permute.xlu0 %905
        %907 = vrot.lane.b32.xlu0 %v611, 32
        %v908 = vpop.permute.xlu0 %907
        %909 = vrot.lane.b32.xlu0 %v612, 32
        %v910 = vpop.permute.xlu0 %909
        %911 = vrot.lane.b32.xlu0 %v613, 32
        %v912 = vpop.permute.xlu0 %911
        %913 = vrot.lane.b32.xlu0 %v614, 32
        %v914 = vpop.permute.xlu0 %913
        %915 = vrot.lane.b32.xlu0 %v615, 32
        %v916 = vpop.permute.xlu0 %915
        %917 = vrot.lane.b32.xlu0 %v616, 32
        %v918 = vpop.permute.xlu0 %917
        %919 = vrot.lane.b32.xlu0 %v617, 32
        %v920 = vpop.permute.xlu0 %919
        %v923 = vsel %vm299, %v882, %v906
        %v927 = vsel %vm299, %v884, %v908
        %v931 = vsel %vm299, %v886, %v910
        %v935 = vsel %vm299, %v888, %v912
        %v939 = vsel %vm299, %v890, %v914
        %v943 = vsel %vm299, %v892, %v916
        %v947 = vsel %vm299, %v894, %v918
        %v951 = vsel %vm299, %v896, %v920
        %v953 = vpack.c.bf16 %v702, %v699
        %v954 = vpack.c.bf16 %v710, %v707
        %963 = vrot.lane.b32.xlu0 %v793, 96
        %v964 = vpop.permute.xlu0 %963
        %965 = vrot.lane.b32.xlu0 %v794, 96
        %v966 = vpop.permute.xlu0 %965
        %967 = vrot.lane.b32.xlu0 %v795, 96
        %v968 = vpop.permute.xlu0 %967
        %969 = vrot.lane.b32.xlu0 %v796, 96
        %v970 = vpop.permute.xlu0 %969
        %971 = vrot.lane.b32.xlu0 %v797, 96
        %v972 = vpop.permute.xlu0 %971
        %973 = vrot.lane.b32.xlu0 %v798, 96
        %v974 = vpop.permute.xlu0 %973
        %975 = vrot.lane.b32.xlu0 %v799, 96
        %v976 = vpop.permute.xlu0 %975
        %977 = vrot.lane.b32.xlu0 %v800, 96
        %v978 = vpop.permute.xlu0 %977
        %v980 = vsel %vm299, %v953, 0
        %v983 = vsel %vm299, %v954, 0
        %v986 = vsel %vm299, %v964, 0
        %v989 = vsel %vm299, %v966, 0
        %v992 = vsel %vm299, %v968, 0
        %v995 = vsel %vm299, %v970, 0
        %v998 = vsel %vm299, %v972, 0
        %v1001 = vsel %vm299, %v974, 0
        %v1004 = vsel %vm299, %v976, 0
        %v1007 = vsel %vm299, %v978, 0
        %1009 = vmatprep.subr.bf16.mxu0 0
        %1010 = vmatpush1.bf16.xpose.msra.mxu0 %v1007
        %1011 = vmatprep.subr.bf16.mxu0 0
        %1012 = vmatpush1.bf16.xpose.msra.mxu0 %v1004
        %1013 = vmatprep.subr.bf16.mxu0 0
        %1014 = vmatpush1.bf16.xpose.msra.mxu0 %v1001
        %1015 = vmatprep.subr.bf16.mxu0 0
        %1016 = vmatpush1.bf16.xpose.msra.mxu0 %v998
        %1017 = vmatprep.subr.bf16.mxu0 0
        %1018 = vmatpush1.bf16.xpose.msra.mxu0 %v995
        %1019 = vmatprep.subr.bf16.mxu0 0
        %1020 = vmatpush1.bf16.xpose.msra.mxu0 %v992
        %1021 = vmatprep.subr.bf16.mxu0 0
        %1022 = vmatpush1.bf16.xpose.msra.mxu0 %v989
        %1023 = vmatprep.subr.bf16.mxu0 0
        %1024 = vmatpush1.bf16.xpose.msra.mxu0 %v986
        %1025 = vmatprep.subr.bf16.mxu0 0
        %1026 = vmatpush2.bf16.xpose.msra.mxu0 0
        %1027 = vmatprep.subr.bf16.mxu0 0
        %1028 = vmatpush2.bf16.xpose.msra.mxu0 0
        %1029 = vmatprep.subr.bf16.mxu0 0
        %1030 = vmatpush2.bf16.xpose.msra.mxu0 0
        %1031 = vmatprep.subr.bf16.mxu0 0
        %1032 = vmatpush2.bf16.xpose.msra.mxu0 0
        %1033 = vmatprep.subr.bf16.mxu0 0
        %1034 = vmatpush2.bf16.xpose.msra.mxu0 0
        %1035 = vmatprep.subr.bf16.mxu0 0
        %1036 = vmatpush2.bf16.xpose.msra.mxu0 0
        %1037 = vmatprep.subr.bf16.mxu0 0
        %1038 = vmatpush2.bf16.xpose.msra.mxu0 0
        %1039 = vmatprep.subr.bf16.mxu0 0
        %1040 = vmatpush2.bf16.xpose.msra.mxu0 0
        %1041 = vmatprep.mubr.bf16.mxu0 0
        %1042 = vmatmul.mubr.bf16.gmra.mxu0 %v980
        %v1043 = vpop.f32.mrf.mxu0
        %v1044 = vadd.f32 %v618, %v1043
        %v1045 = vpop.f32.mrf.mxu0
        %v1046 = vpop.f32.mrf.mxu0
        %v1047 = vadd.f32 %v619, %v1046
        %v1048 = vpop.f32.mrf.mxu0
        %1049 = vmatprep.mubr.bf16.mxu0 0
        %1050 = vmatmul.mubr.bf16.gmra.mxu0 %v983
        %v1051 = vpop.f32.mrf.mxu0
        %v1052 = vadd.f32 %v620, %v1051
        %v1053 = vpop.f32.mrf.mxu0
        %v1054 = vpop.f32.mrf.mxu0
        %v1055 = vadd.f32 %v621, %v1054
        %v1056 = vpop.f32.mrf.mxu0
        %1057 = vdwg.mxu0
        %1058 = vmax.xlane.f32.xlu0 %v1044
        %v1059 = vpop.xlane.xlu0 %1058
        %1060 = vmax.xlane.f32.xlu0 %v1047
        %v1061 = vpop.xlane.xlu0 %1060
        %1062 = vmax.xlane.f32.xlu0 %v1052
        %v1063 = vpop.xlane.xlu0 %1062
        %1064 = vmax.xlane.f32.xlu0 %v1055
        %v1065 = vpop.xlane.xlu0 %1064
        %v1066 = vsub.f32 %v1044, %v1059
        %v1067 = vsub.f32 %v1047, %v1061
        %v1068 = vsub.f32 %v1052, %v1063
        %v1069 = vsub.f32 %v1055, %v1065
        %v1070 = vmul.f32 %v1066, 1.442695
        %v1071 = vpow.pop %v1070
        %v1072 = vmul.f32 %v1067, 1.442695
        %v1073 = vpow.pop %v1072
        %v1074 = vmul.f32 %v1068, 1.442695
        %v1075 = vpow.pop %v1074
        %v1076 = vmul.f32 %v1069, 1.442695
        %v1077 = vpow.pop %v1076
        %v1078 = vpack.c.bf16 %v1073, %v1071
        %v1079 = vpack.c.bf16 %v1077, %v1075
        %1080 = vmatprep.subr.bf16.mxu0 0
        %1081 = vmatpush1.bf16.msra.mxu0 %v951
        %1082 = vmatprep.subr.bf16.mxu0 0
        %1083 = vmatpush1.bf16.msra.mxu0 %v947
        %1084 = vmatprep.subr.bf16.mxu0 0
        %1085 = vmatpush1.bf16.msra.mxu0 %v943
        %1086 = vmatprep.subr.bf16.mxu0 0
        %1087 = vmatpush1.bf16.msra.mxu0 %v939
        %1088 = vmatprep.subr.bf16.mxu0 0
        %1089 = vmatpush1.bf16.msra.mxu0 %v935
        %1090 = vmatprep.subr.bf16.mxu0 0
        %1091 = vmatpush1.bf16.msra.mxu0 %v931
        %1092 = vmatprep.subr.bf16.mxu0 0
        %1093 = vmatpush1.bf16.msra.mxu0 %v927
        %1094 = vmatprep.subr.bf16.mxu0 0
        %1095 = vmatpush1.bf16.msra.mxu0 %v923
        %1096 = vmatprep.subr.bf16.mxu0 0
        %1097 = vmatpush2.bf16.msra.mxu0 0
        %1098 = vmatprep.subr.bf16.mxu0 0
        %1099 = vmatpush2.bf16.msra.mxu0 0
        %1100 = vmatprep.subr.bf16.mxu0 0
        %1101 = vmatpush2.bf16.msra.mxu0 0
        %1102 = vmatprep.subr.bf16.mxu0 0
        %1103 = vmatpush2.bf16.msra.mxu0 0
        %1104 = vmatprep.subr.bf16.mxu0 0
        %1105 = vmatpush2.bf16.msra.mxu0 0
        %1106 = vmatprep.subr.bf16.mxu0 0
        %1107 = vmatpush2.bf16.msra.mxu0 0
        %1108 = vmatprep.subr.bf16.mxu0 0
        %1109 = vmatpush2.bf16.msra.mxu0 0
        %1110 = vmatprep.subr.bf16.mxu0 0
        %1111 = vmatpush2.bf16.msra.mxu0 0
        %1112 = vmatprep.mubr.bf16.mxu0 0
        %1113 = vmatmul.mubr.bf16.gmra.mxu0 %v1078
        %v1114 = vpop.f32.mrf.mxu0
        %v1115 = vadd.f32 0.0, %v1114
        %v1116 = vpop.f32.mrf.mxu0
        %v1117 = vpop.f32.mrf.mxu0
        %v1118 = vadd.f32 0.0, %v1117
        %v1119 = vpop.f32.mrf.mxu0
        %1120 = vmatprep.mubr.bf16.mxu0 0
        %1121 = vmatmul.mubr.bf16.gmra.mxu0 %v1079
        %v1122 = vpop.f32.mrf.mxu0
        %v1123 = vadd.f32 0.0, %v1122
        %v1124 = vpop.f32.mrf.mxu0
        %v1125 = vpop.f32.mrf.mxu0
        %v1126 = vadd.f32 0.0, %v1125
        %v1127 = vpop.f32.mrf.mxu0
        %1128 = vdwg.mxu0
        %v1129 = vrcp.pop %v1115
        %v1130 = vrcp.pop %v1118
        %v1131 = vrcp.pop %v1123
        %v1132 = vrcp.pop %v1126
        %1137 = vrot.lane.b32.xlu0 %v1129, 96
        %v1138 = vpop.permute.xlu0 %1137
        %1139 = vrot.lane.b32.xlu0 %v1130, 96
        %v1140 = vpop.permute.xlu0 %1139
        %1141 = vrot.lane.b32.xlu0 %v1131, 96
        %v1142 = vpop.permute.xlu0 %1141
        %1143 = vrot.lane.b32.xlu0 %v1132, 96
        %v1144 = vpop.permute.xlu0 %1143
        %v1149 = vmul.f32 %v1115, %v1138
        %v1150 = vmul.f32 %v1118, %v1140
        %v1151 = vmul.f32 %v1123, %v1142
        %v1152 = vmul.f32 %v1126, %v1144
        %v1153 = vpack.c.bf16 %v1150, %v1149
        %v1154 = vpack.c.bf16 %v1152, %v1151
        %v1155 = vlaneseq
        %v1156 = vshrl.u32 %v1155, 7
        %v1157 = vsub.s32 0, %v1156
        %v1158 = vrot.slane %v633, %v1157
        %1159 = vrot.lane.b32.xlu0 %v654, 32
        %v1160 = vpop.permute.xlu0 %1159
        %1161 = vrot.lane.b32.xlu0 %v655, 32
        %v1162 = vpop.permute.xlu0 %1161
        %v1166 = vsel %vm299, %v1153, 0
        %v1169 = vsel %vm299, %v1154, 0
        %1171 = vmatprep.subr.bf16.mxu0 0
        %1172 = vmatpush1.bf16.msra.mxu0 0
        %1173 = vmatprep.subr.bf16.mxu0 0
        %1174 = vmatpush1.bf16.msra.mxu0 0
        %1175 = vmatprep.subr.bf16.mxu0 0
        %1176 = vmatpush1.bf16.msra.mxu0 0
        %1177 = vmatprep.subr.bf16.mxu0 0
        %1178 = vmatpush1.bf16.msra.mxu0 0
        %1179 = vmatprep.subr.bf16.mxu0 0
        %1180 = vmatpush1.bf16.msra.mxu0 0
        %1181 = vmatprep.subr.bf16.mxu0 0
        %1182 = vmatpush1.bf16.msra.mxu0 0
        %1183 = vmatprep.subr.bf16.mxu0 0
        %1184 = vmatpush1.bf16.msra.mxu0 %v1162
        %1185 = vmatprep.subr.bf16.mxu0 0
        %1186 = vmatpush1.bf16.msra.mxu0 %v1160
        %1187 = vmatprep.subr.bf16.mxu0 0
        %1188 = vmatpush2.bf16.msra.mxu0 0
        %1189 = vmatprep.subr.bf16.mxu0 0
        %1190 = vmatpush2.bf16.msra.mxu0 0
        %1191 = vmatprep.subr.bf16.mxu0 0
        %1192 = vmatpush2.bf16.msra.mxu0 0
        %1193 = vmatprep.subr.bf16.mxu0 0
        %1194 = vmatpush2.bf16.msra.mxu0 0
        %1195 = vmatprep.subr.bf16.mxu0 0
        %1196 = vmatpush2.bf16.msra.mxu0 0
        %1197 = vmatprep.subr.bf16.mxu0 0
        %1198 = vmatpush2.bf16.msra.mxu0 0
        %1199 = vmatprep.subr.bf16.mxu0 0
        %1200 = vmatpush2.bf16.msra.mxu0 0
        %1201 = vmatprep.subr.bf16.mxu0 0
        %1202 = vmatpush2.bf16.msra.mxu0 0
        %1203 = vmatprep.mubr.bf16.mxu0 0
        %1204 = vmatmul.mubr.bf16.gmra.mxu0 %v1166
        %v1205 = vpop.f32.mrf.mxu0
        %v1206 = vadd.f32 %v1158, %v1205
        %v1207 = vpop.f32.mrf.mxu0
        %v1208 = vpop.f32.mrf.mxu0
        %v1209 = vadd.f32 %v1158, %v1208
        %v1210 = vpop.f32.mrf.mxu0
        %1211 = vmatprep.mubr.bf16.mxu0 0
        %1212 = vmatmul.mubr.bf16.gmra.mxu0 %v1169
        %v1213 = vpop.f32.mrf.mxu0
        %v1214 = vadd.f32 %v1158, %v1213
        %v1215 = vpop.f32.mrf.mxu0
        %v1216 = vpop.f32.mrf.mxu0
        %v1217 = vadd.f32 %v1158, %v1216
        %v1218 = vpop.f32.mrf.mxu0
        %1219 = vdwg.mxu0
        %v1220 = vadd.f32 %v590, %v1206
        %v1221 = vadd.f32 %v591, %v1209
        %v1222 = vadd.f32 %v592, %v1214
        %v1223 = vadd.f32 %v593, %v1217
        %v1224 = vsel %vm299, %v1220, 0.0
        %1225 = vadd.xlane.f32.xlu0 %v1224
        %v1226 = vpop.xlane.xlu0 %1225
        %v1227 = vsel %vm299, %v1221, 0.0
        %1228 = vadd.xlane.f32.xlu0 %v1227
        %v1229 = vpop.xlane.xlu0 %1228
        %v1230 = vsel %vm299, %v1222, 0.0
        %1231 = vadd.xlane.f32.xlu0 %v1230
        %v1232 = vpop.xlane.xlu0 %1231
        %v1233 = vsel %vm299, %v1223, 0.0
        %1234 = vadd.xlane.f32.xlu0 %v1233
        %v1235 = vpop.xlane.xlu0 %1234
        %v1236 = vrcp.pop 32.0
        %v1237 = vmul.f32 %v1226, %v1236
        %v1238 = vmul.f32 %v1229, %v1236
        %v1239 = vmul.f32 %v1232, %v1236
        %v1240 = vmul.f32 %v1235, %v1236
        %v1241 = vsub.f32 %v1220, %v1237
        %v1242 = vsub.f32 %v1221, %v1238
        %v1243 = vsub.f32 %v1222, %v1239
        %v1244 = vsub.f32 %v1223, %v1240
        %v1245 = vmul.f32 %v1241, %v1241
        %v1246 = vmul.f32 %v1242, %v1242
        %v1247 = vmul.f32 %v1243, %v1243
        %v1248 = vmul.f32 %v1244, %v1244
        %v1249 = vsel %vm299, %v1245, 0.0
        %1250 = vadd.xlane.f32.xlu0 %v1249
        %v1251 = vpop.xlane.xlu0 %1250
        %v1252 = vsel %vm299, %v1246, 0.0
        %1253 = vadd.xlane.f32.xlu0 %v1252
        %v1254 = vpop.xlane.xlu0 %1253
        %v1255 = vsel %vm299, %v1247, 0.0
        %1256 = vadd.xlane.f32.xlu0 %v1255
        %v1257 = vpop.xlane.xlu0 %1256
        %v1258 = vsel %vm299, %v1248, 0.0
        %1259 = vadd.xlane.f32.xlu0 %v1258
        %v1260 = vpop.xlane.xlu0 %1259
        %v1261 = vmul.f32 %v1251, %v1236
        %v1262 = vmul.f32 %v1254, %v1236
        %v1263 = vmul.f32 %v1257, %v1236
        %v1264 = vmul.f32 %v1260, %v1236
        %v1265 = vadd.f32 %v1261, 1e-05
        %v1266 = vadd.f32 %v1262, 1e-05
        %v1267 = vadd.f32 %v1263, 1e-05
        %v1268 = vadd.f32 %v1264, 1e-05
        %v1269 = vrsqrt.pop %v1265
        %v1270 = vrsqrt.pop %v1266
        %v1271 = vrsqrt.pop %v1267
        %v1272 = vrsqrt.pop %v1268
        %v1273 = vmul.f32 %v1241, %v1269
        %v1274 = vmul.f32 %v1242, %v1270
        %v1275 = vmul.f32 %v1243, %v1271
        %v1276 = vmul.f32 %v1244, %v1272
        %v1277 = vlaneseq
        %v1278 = vshrl.u32 %v1277, 7
        %v1279 = vsub.s32 0, %v1278
        %v1280 = vrot.slane %v636, %v1279
        %v1281 = vmul.f32 %v1273, %v1280
        %v1282 = vmul.f32 %v1274, %v1280
        %v1283 = vmul.f32 %v1275, %v1280
        %v1284 = vmul.f32 %v1276, %v1280
        %v1285 = vlaneseq
        %v1286 = vshrl.u32 %v1285, 7
        %v1287 = vsub.s32 0, %v1286
        %v1288 = vrot.slane %v637, %v1287
        %v1289 = vadd.f32 %v1281, %v1288
        %v1290 = vadd.f32 %v1282, %v1288
        %v1291 = vadd.f32 %v1283, %v1288
        %v1292 = vadd.f32 %v1284, %v1288
        %v1293 = vpack.c.bf16 %v1290, %v1289
        %v1294 = vpack.c.bf16 %v1292, %v1291
        %v1295 = vlaneseq
        %v1296 = vshrl.u32 %v1295, 7
        %v1297 = vsub.s32 0, %v1296
        %v1298 = vrot.slane %v634, %v1297
        %v1299 = vunpack.c.h.b16 %v624
        %v1300 = vunpack.c.h.b16 %v626
        %v1301 = vunpack.c.h.b16 %v628
        %v1302 = vunpack.c.h.b16 %v630
        %v1303 = vpack.c.b16 %v1300, %v1299
        %v1304 = vpack.c.b16 %v1302, %v1301
        %v1308 = vsel %vm299, %v1293, 0
        %v1311 = vsel %vm299, %v1294, 0
        %1313 = vmatprep.subr.bf16.mxu0 0
        %1314 = vmatpush1.bf16.msra.mxu0 0
        %1315 = vmatprep.subr.bf16.mxu0 0
        %1316 = vmatpush1.bf16.msra.mxu0 0
        %1317 = vmatprep.subr.bf16.mxu0 0
        %1318 = vmatpush1.bf16.msra.mxu0 0
        %1319 = vmatprep.subr.bf16.mxu0 0
        %1320 = vmatpush1.bf16.msra.mxu0 0
        %1321 = vmatprep.subr.bf16.mxu0 0
        %1322 = vmatpush1.bf16.msra.mxu0 0
        %1323 = vmatprep.subr.bf16.mxu0 0
        %1324 = vmatpush1.bf16.msra.mxu0 0
        %1325 = vmatprep.subr.bf16.mxu0 0
        %1326 = vmatpush1.bf16.msra.mxu0 %v1304
        %1327 = vmatprep.subr.bf16.mxu0 0
        %1328 = vmatpush1.bf16.msra.mxu0 %v1303
        %1329 = vmatprep.subr.bf16.mxu0 0
        %1330 = vmatpush2.bf16.msra.mxu0 0
        %1331 = vmatprep.subr.bf16.mxu0 0
        %1332 = vmatpush2.bf16.msra.mxu0 0
        %1333 = vmatprep.subr.bf16.mxu0 0
        %1334 = vmatpush2.bf16.msra.mxu0 0
        %1335 = vmatprep.subr.bf16.mxu0 0
        %1336 = vmatpush2.bf16.msra.mxu0 0
        %1337 = vmatprep.subr.bf16.mxu0 0
        %1338 = vmatpush2.bf16.msra.mxu0 0
        %1339 = vmatprep.subr.bf16.mxu0 0
        %1340 = vmatpush2.bf16.msra.mxu0 0
        %1341 = vmatprep.subr.bf16.mxu0 0
        %1342 = vmatpush2.bf16.msra.mxu0 0
        %1343 = vmatprep.subr.bf16.mxu0 0
        %1344 = vmatpush2.bf16.msra.mxu0 0
        %1345 = vmatprep.mubr.bf16.mxu0 0
        %1346 = vmatmul.mubr.bf16.gmra.mxu0 %v1308
        %v1347 = vpop.f32.mrf.mxu0
        %v1348 = vadd.f32 %v1298, %v1347
        %v1349 = vpop.f32.mrf.mxu0
        %v1350 = vpop.f32.mrf.mxu0
        %v1351 = vadd.f32 %v1298, %v1350
        %v1352 = vpop.f32.mrf.mxu0
        %1353 = vmatprep.mubr.bf16.mxu0 0
        %1354 = vmatmul.mubr.bf16.gmra.mxu0 %v1311
        %v1355 = vpop.f32.mrf.mxu0
        %v1356 = vadd.f32 %v1298, %v1355
        %v1357 = vpop.f32.mrf.mxu0
        %v1358 = vpop.f32.mrf.mxu0
        %v1359 = vadd.f32 %v1298, %v1358
        %v1360 = vpop.f32.mrf.mxu0
        %1361 = vdwg.mxu0
        %v1362 = vmul.f32 %v1348, 0.5
        %v1363 = vmul.f32 %v1351, 0.5
        %v1364 = vmul.f32 %v1356, 0.5
        %v1365 = vmul.f32 %v1359, 0.5
        %v1366 = vmul.f32 %v1348, %v1348
        %v1367 = vmul.f32 %v1351, %v1351
        %v1368 = vmul.f32 %v1356, %v1356
        %v1369 = vmul.f32 %v1359, %v1359
        %v1370 = vmul.f32 %v1366, %v1348
        %v1371 = vmul.f32 %v1367, %v1351
        %v1372 = vmul.f32 %v1368, %v1356
        %v1373 = vmul.f32 %v1369, %v1359
        %v1374 = vmul.f32 %v1370, 0.044715
        %v1375 = vmul.f32 %v1371, 0.044715
        %v1376 = vmul.f32 %v1372, 0.044715
        %v1377 = vmul.f32 %v1373, 0.044715
        %v1378 = vadd.f32 %v1348, %v1374
        %v1379 = vadd.f32 %v1351, %v1375
        %v1380 = vadd.f32 %v1356, %v1376
        %v1381 = vadd.f32 %v1359, %v1377
        %v1382 = vmul.f32 %v1378, 0.7978846
        %v1383 = vmul.f32 %v1379, 0.7978846
        %v1384 = vmul.f32 %v1380, 0.7978846
        %v1385 = vmul.f32 %v1381, 0.7978846
        %v1386 = vtanh.pop %v1382
        %v1387 = vtanh.pop %v1383
        %v1388 = vtanh.pop %v1384
        %v1389 = vtanh.pop %v1385
        %v1390 = vadd.f32 %v1386, 1.0
        %v1391 = vadd.f32 %v1387, 1.0
        %v1392 = vadd.f32 %v1388, 1.0
        %v1393 = vadd.f32 %v1389, 1.0
        %v1394 = vmul.f32 %v1362, %v1390
        %v1395 = vmul.f32 %v1363, %v1391
        %v1396 = vmul.f32 %v1364, %v1392
        %v1397 = vmul.f32 %v1365, %v1393
        %v1398 = vpack.c.bf16 %v1395, %v1394
        %v1399 = vpack.c.bf16 %v1397, %v1396
        %v1400 = vlaneseq
        %v1401 = vshrl.u32 %v1400, 7
        %v1402 = vsub.s32 0, %v1401
        %v1403 = vrot.slane %v635, %v1402
        %v1408 = vunpack.c.l.b16 %v625
        %v1409 = vunpack.c.l.b16 %v627
        %v1410 = vunpack.c.l.b16 %v629
        %v1411 = vunpack.c.l.b16 %v631
        %v1412 = vpack.c.b16 %v1409, %v1408
        %v1413 = vpack.c.b16 %v1411, %v1410
        %1416 = vmatprep.subr.bf16.mxu0 0
        %1417 = vmatpush1.bf16.xpose.msra.mxu0 0
        %1418 = vmatprep.subr.bf16.mxu0 0
        %1419 = vmatpush1.bf16.xpose.msra.mxu0 0
        %1420 = vmatprep.subr.bf16.mxu0 0
        %1421 = vmatpush1.bf16.xpose.msra.mxu0 0
        %1422 = vmatprep.subr.bf16.mxu0 0
        %1423 = vmatpush1.bf16.xpose.msra.mxu0 0
        %1424 = vmatprep.subr.bf16.mxu0 0
        %1425 = vmatpush1.bf16.xpose.msra.mxu0 0
        %1426 = vmatprep.subr.bf16.mxu0 0
        %1427 = vmatpush1.bf16.xpose.msra.mxu0 0
        %1428 = vmatprep.subr.bf16.mxu0 0
        %1429 = vmatpush1.bf16.xpose.msra.mxu0 %v1413
        %1430 = vmatprep.subr.bf16.mxu0 0
        %1431 = vmatpush1.bf16.xpose.msra.mxu0 %v1412
        %1432 = vmatprep.subr.bf16.mxu0 0
        %1433 = vmatpush2.bf16.xpose.msra.mxu0 0
        %1434 = vmatprep.subr.bf16.mxu0 0
        %1435 = vmatpush2.bf16.xpose.msra.mxu0 0
        %1436 = vmatprep.subr.bf16.mxu0 0
        %1437 = vmatpush2.bf16.xpose.msra.mxu0 0
        %1438 = vmatprep.subr.bf16.mxu0 0
        %1439 = vmatpush2.bf16.xpose.msra.mxu0 0
        %1440 = vmatprep.subr.bf16.mxu0 0
        %1441 = vmatpush2.bf16.xpose.msra.mxu0 0
        %1442 = vmatprep.subr.bf16.mxu0 0
        %1443 = vmatpush2.bf16.xpose.msra.mxu0 0
        %1444 = vmatprep.subr.bf16.mxu0 0
        %1445 = vmatpush2.bf16.xpose.msra.mxu0 0
        %1446 = vmatprep.subr.bf16.mxu0 0
        %1447 = vmatpush2.bf16.xpose.msra.mxu0 0
        %1448 = vmatprep.mubr.bf16.mxu0 0
        %1449 = vmatmul.mubr.bf16.gmra.mxu0 %v1398
        %v1450 = vpop.f32.mrf.mxu0
        %v1451 = vadd.f32 %v1403, %v1450
        %v1452 = vpop.f32.mrf.mxu0
        %v1453 = vpop.f32.mrf.mxu0
        %v1454 = vadd.f32 %v1403, %v1453
        %v1455 = vpop.f32.mrf.mxu0
        %1456 = vmatprep.mubr.bf16.mxu0 0
        %1457 = vmatmul.mubr.bf16.gmra.mxu0 %v1399
        %v1458 = vpop.f32.mrf.mxu0
        %v1459 = vadd.f32 %v1403, %v1458
        %v1460 = vpop.f32.mrf.mxu0
        %v1461 = vpop.f32.mrf.mxu0
        %v1462 = vadd.f32 %v1403, %v1461
        %v1463 = vpop.f32.mrf.mxu0
        %1464 = vdwg.mxu0
        %v1465 = vadd.f32 %v1289, %v1451
        %v1466 = vadd.f32 %v1290, %v1454
        %v1467 = vadd.f32 %v1291, %v1459
        %v1468 = vadd.f32 %v1292, %v1462
        %v1469 = vsel %vm299, %v1465, 0.0
        %1470 = vadd.xlane.f32.xlu0 %v1469
        %v1471 = vpop.xlane.xlu0 %1470
        %v1472 = vsel %vm299, %v1466, 0.0
        %1473 = vadd.xlane.f32.xlu0 %v1472
        %v1474 = vpop.xlane.xlu0 %1473
        %v1475 = vsel %vm299, %v1467, 0.0
        %1476 = vadd.xlane.f32.xlu0 %v1475
        %v1477 = vpop.xlane.xlu0 %1476
        %v1478 = vsel %vm299, %v1468, 0.0
        %1479 = vadd.xlane.f32.xlu0 %v1478
        %v1480 = vpop.xlane.xlu0 %1479
        %v1481 = vmul.f32 %v1471, %v1236
        %v1482 = vmul.f32 %v1474, %v1236
        %v1483 = vmul.f32 %v1477, %v1236
        %v1484 = vmul.f32 %v1480, %v1236
        %v1485 = vsub.f32 %v1465, %v1481
        %v1486 = vsub.f32 %v1466, %v1482
        %v1487 = vsub.f32 %v1467, %v1483
        %v1488 = vsub.f32 %v1468, %v1484
        %v1489 = vmul.f32 %v1485, %v1485
        %v1490 = vmul.f32 %v1486, %v1486
        %v1491 = vmul.f32 %v1487, %v1487
        %v1492 = vmul.f32 %v1488, %v1488
        %v1493 = vsel %vm299, %v1489, 0.0
        %1494 = vadd.xlane.f32.xlu0 %v1493
        %v1495 = vpop.xlane.xlu0 %1494
        %v1496 = vsel %vm299, %v1490, 0.0
        %1497 = vadd.xlane.f32.xlu0 %v1496
        %v1498 = vpop.xlane.xlu0 %1497
        %v1499 = vsel %vm299, %v1491, 0.0
        %1500 = vadd.xlane.f32.xlu0 %v1499
        %v1501 = vpop.xlane.xlu0 %1500
        %v1502 = vsel %vm299, %v1492, 0.0
        %1503 = vadd.xlane.f32.xlu0 %v1502
        %v1504 = vpop.xlane.xlu0 %1503
        %v1505 = vmul.f32 %v1495, %v1236
        %v1506 = vmul.f32 %v1498, %v1236
        %v1507 = vmul.f32 %v1501, %v1236
        %v1508 = vmul.f32 %v1504, %v1236
        %v1509 = vadd.f32 %v1505, 1e-05
        %v1510 = vadd.f32 %v1506, 1e-05
        %v1511 = vadd.f32 %v1507, 1e-05
        %v1512 = vadd.f32 %v1508, 1e-05
        %v1513 = vrsqrt.pop %v1509
        %v1514 = vrsqrt.pop %v1510
        %v1515 = vrsqrt.pop %v1511
        %v1516 = vrsqrt.pop %v1512
        %v1517 = vmul.f32 %v1485, %v1513
        %v1518 = vmul.f32 %v1486, %v1514
        %v1519 = vmul.f32 %v1487, %v1515
        %v1520 = vmul.f32 %v1488, %v1516
        %v1521 = vlaneseq
        %v1522 = vshrl.u32 %v1521, 7
        %v1523 = vsub.s32 0, %v1522
        %v1524 = vrot.slane %v638, %v1523
        %v1525 = vmul.f32 %v1517, %v1524
        %v1526 = vmul.f32 %v1518, %v1524
        %v1527 = vmul.f32 %v1519, %v1524
        %v1528 = vmul.f32 %v1520, %v1524
        %v1529 = vlaneseq
        %v1530 = vshrl.u32 %v1529, 7
        %v1531 = vsub.s32 0, %v1530
        %v1532 = vrot.slane %v639, %v1531
        %v1533 = vadd.f32 %v1525, %v1532
        %v1534 = vadd.f32 %v1526, %v1532
        %v1535 = vadd.f32 %v1527, %v1532
        %v1536 = vadd.f32 %v1528, %v1532
        %s1537 = scalar_lea.vmem [#allocation5], 48
        %v1538 = vld [vmem:[%s1537] sm:$0xff]
        %v1539 = vld [vmem:[%s1537 + $0x8] sm:$0xf]
        %v1540 = vld [vmem:[%s1537 + $0xc] sm:$0xff]
        %v1541 = vld [vmem:[%s1537 + $0x14] sm:$0xf]
        %v1542 = vld [vmem:[%s1537 + $0x18] sm:$0xff]
        %v1543 = vld [vmem:[%s1537 + $0x20] sm:$0xf]
        %v1544 = vld [vmem:[%s1537 + $0x24] sm:$0xff]
        %v1545 = vld [vmem:[%s1537 + $0x2c] sm:$0xf]
        %v1546 = vld [vmem:[#allocation8 + $0x38] sm:$0x1]
        %v1547 = vld [vmem:[#allocation8 + $0x39] sm:$0x1]
        %v1548 = vld [vmem:[#allocation8 + $0x3a] sm:$0x1]
        %v1549 = vld [vmem:[#allocation8 + $0x3b] sm:$0x1]
        %v1550 = vld [vmem:[#allocation8 + $0x3c] sm:$0x1]
        %v1551 = vld [vmem:[#allocation8 + $0x3d] sm:$0x1]
        %v1552 = vld [vmem:[#allocation8 + $0x3e] sm:$0x1]
        %v1553 = vld [vmem:[#allocation8 + $0x3f] sm:$0x1]
        %v1555 = vsel %vm299, %v623, 0
        %1557 = vmatprep.subr.mxu0 0.0
        %1558 = vmatpush1.msra.mxu0 0.0
        %1559 = vmatprep.subr.mxu0 0.0
        %1560 = vmatpush1.msra.mxu0 0.0
        %1561 = vmatprep.subr.mxu0 0.0
        %1562 = vmatpush1.msra.mxu0 0.0
        %1563 = vmatprep.subr.mxu0 0.0
        %1564 = vmatpush1.msra.mxu0 0.0
        %1565 = vmatprep.subr.mxu0 0.0
        %1566 = vmatpush1.msra.mxu0 0.0
        %1567 = vmatprep.subr.mxu0 0.0
        %1568 = vmatpush1.msra.mxu0 0.0
        %1569 = vmatprep.subr.mxu0 0.0
        %1570 = vmatpush1.msra.mxu0 0.0
        %1571 = vmatprep.subr.mxu0 0.0
        %1572 = vmatpush1.msra.mxu0 0.0
        %1573 = vmatprep.subr.mxu0 0.0
        %1574 = vmatpush1.msra.mxu0 0.0
        %1575 = vmatprep.subr.mxu0 0.0
        %1576 = vmatpush1.msra.mxu0 0.0
        %1577 = vmatprep.subr.mxu0 0.0
        %1578 = vmatpush1.msra.mxu0 0.0
        %1579 = vmatprep.subr.mxu0 0.0
        %1580 = vmatpush1.msra.mxu0 0.0
        %1581 = vmatprep.subr.mxu0 0.0
        %1582 = vmatpush1.msra.mxu0 %v1536
        %1583 = vmatprep.subr.mxu0 0.0
        %1584 = vmatpush1.msra.mxu0 %v1535
        %1585 = vmatprep.subr.mxu0 0.0
        %1586 = vmatpush1.msra.mxu0 %v1534
        %1587 = vmatprep.subr.mxu0 0.0
        %1588 = vmatpush1.msra.mxu0 %v1533
        %1589 = vmatprep.subr.mxu0 0.0
        %1590 = vmatpush2.msra.mxu0 0.0
        %1591 = vmatprep.subr.mxu0 0.0
        %1592 = vmatpush2.msra.mxu0 0.0
        %1593 = vmatprep.subr.mxu0 0.0
        %1594 = vmatpush2.msra.mxu0 0.0
        %1595 = vmatprep.subr.mxu0 0.0
        %1596 = vmatpush2.msra.mxu0 0.0
        %1597 = vmatprep.subr.mxu0 0.0
        %1598 = vmatpush2.msra.mxu0 0.0
        %1599 = vmatprep.subr.mxu0 0.0
        %1600 = vmatpush2.msra.mxu0 0.0
        %1601 = vmatprep.subr.mxu0 0.0
        %1602 = vmatpush2.msra.mxu0 0.0
        %1603 = vmatprep.subr.mxu0 0.0
        %1604 = vmatpush2.msra.mxu0 0.0
        %1605 = vmatprep.subr.mxu0 0.0
        %1606 = vmatpush2.msra.mxu0 0.0
        %1607 = vmatprep.subr.mxu0 0.0
        %1608 = vmatpush2.msra.mxu0 0.0
        %1609 = vmatprep.subr.mxu0 0.0
        %1610 = vmatpush2.msra.mxu0 0.0
        %1611 = vmatprep.subr.mxu0 0.0
        %1612 = vmatpush2.msra.mxu0 0.0
        %1613 = vmatprep.subr.mxu0 0.0
        %1614 = vmatpush2.msra.mxu0 0.0
        %1615 = vmatprep.subr.mxu0 0.0
        %1616 = vmatpush2.msra.mxu0 0.0
        %1617 = vmatprep.subr.mxu0 0.0
        %1618 = vmatpush2.msra.mxu0 0.0
        %1619 = vmatprep.subr.mxu0 0.0
        %1620 = vmatpush2.msra.mxu0 0.0
        %1621 = vmatprep.mubr.f32.mxu0 0.0
        %1622 = vmatmul.mubr.f32.gmra.mxu0 %v1555
        %v1623 = vpop.f32.mrf.mxu0
        %v1624 = vadd.f32 0.0, %v1623
        %v1625 = vpop.f32.mrf.mxu0
        %1626 = vdwg.mxu0
        %v1627 = vpack.c.bf16 %v1534, %v1533
        %v1628 = vpack.c.bf16 %v1536, %v1535
        %v1629 = vlaneseq
        %v1630 = vshrl.u32 %v1629, 7
        %v1631 = vsub.s32 0, %v1630
        %v1632 = vrot.slane %v1546, %v1631
        %v1637 = vunpack.c.l.b16 %v1538
        %v1638 = vunpack.c.l.b16 %v1540
        %v1639 = vunpack.c.l.b16 %v1542
        %v1640 = vunpack.c.l.b16 %v1544
        %v1641 = vpack.c.b16 %v1638, %v1637
        %v1642 = vpack.c.b16 %v1640, %v1639
        %1643 = vrot.lane.b32.xlu0 %v1641, 96
        %v1644 = vpop.permute.xlu0 %1643
        %1645 = vrot.lane.b32.xlu0 %v1642, 96
        %v1646 = vpop.permute.xlu0 %1645
        %1650 = vrot.lane.b32.xlu0 %v1632, 96
        %v1651 = vpop.permute.xlu0 %1650
        %v1654 = vsel %vm299, %v1627, 0
        %v1657 = vsel %vm299, %v1628, 0
        %1659 = vmatprep.subr.bf16.mxu0 0
        %1660 = vmatpush1.bf16.msra.mxu0 0
        %1661 = vmatprep.subr.bf16.mxu0 0
        %1662 = vmatpush1.bf16.msra.mxu0 0
        %1663 = vmatprep.subr.bf16.mxu0 0
        %1664 = vmatpush1.bf16.msra.mxu0 0
        %1665 = vmatprep.subr.bf16.mxu0 0
        %1666 = vmatpush1.bf16.msra.mxu0 0
        %1667 = vmatprep.subr.bf16.mxu0 0
        %1668 = vmatpush1.bf16.msra.mxu0 0
        %1669 = vmatprep.subr.bf16.mxu0 0
        %1670 = vmatpush1.bf16.msra.mxu0 0
        %1671 = vmatprep.subr.bf16.mxu0 0
        %1672 = vmatpush1.bf16.msra.mxu0 %v1646
        %1673 = vmatprep.subr.bf16.mxu0 0
        %1674 = vmatpush1.bf16.msra.mxu0 %v1644
        %1675 = vmatprep.subr.bf16.mxu0 0
        %1676 = vmatpush2.bf16.msra.mxu0 0
        %1677 = vmatprep.subr.bf16.mxu0 0
        %1678 = vmatpush2.bf16.msra.mxu0 0
        %1679 = vmatprep.subr.bf16.mxu0 0
        %1680 = vmatpush2.bf16.msra.mxu0 0
        %1681 = vmatprep.subr.bf16.mxu0 0
        %1682 = vmatpush2.bf16.msra.mxu0 0
        %1683 = vmatprep.subr.bf16.mxu0 0
        %1684 = vmatpush2.bf16.msra.mxu0 0
        %1685 = vmatprep.subr.bf16.mxu0 0
        %1686 = vmatpush2.bf16.msra.mxu0 0
        %1687 = vmatprep.subr.bf16.mxu0 0
        %1688 = vmatpush2.bf16.msra.mxu0 0
        %1689 = vmatprep.subr.bf16.mxu0 0
        %1690 = vmatpush2.bf16.msra.mxu0 0
        %1691 = vmatprep.mubr.bf16.mxu0 0
        %1692 = vmatmul.mubr.bf16.gmra.mxu0 %v1654
        %v1693 = vpop.f32.mrf.mxu0
        %v1694 = vadd.f32 %v1651, %v1693
        %v1695 = vpop.f32.mrf.mxu0
        %v1696 = vpop.f32.mrf.mxu0
        %v1697 = vadd.f32 %v1651, %v1696
        %v1698 = vpop.f32.mrf.mxu0
        %1699 = vmatprep.mubr.bf16.mxu0 0
        %1700 = vmatmul.mubr.bf16.gmra.mxu0 %v1657
        %v1701 = vpop.f32.mrf.mxu0
        %v1702 = vadd.f32 %v1651, %v1701
        %v1703 = vpop.f32.mrf.mxu0
        %v1704 = vpop.f32.mrf.mxu0
        %v1705 = vadd.f32 %v1651, %v1704
        %v1706 = vpop.f32.mrf.mxu0
        %1707 = vdwg.mxu0
        %v1708 = vpack.c.bf16 %v1624, %v1624
        %v1712 = vsel %vm299, %v1708, 0
        %1714 = vmatprep.subr.bf16.mxu0 0
        %1715 = vmatpush1.bf16.msra.mxu0 0
        %1716 = vmatprep.subr.bf16.mxu0 0
        %1717 = vmatpush1.bf16.msra.mxu0 0
        %1718 = vmatprep.subr.bf16.mxu0 0
        %1719 = vmatpush1.bf16.msra.mxu0 0
        %1720 = vmatprep.subr.bf16.mxu0 0
        %1721 = vmatpush1.bf16.msra.mxu0 0
        %1722 = vmatprep.subr.bf16.mxu0 0
        %1723 = vmatpush1.bf16.msra.mxu0 0
        %1724 = vmatprep.subr.bf16.mxu0 0
        %1725 = vmatpush1.bf16.msra.mxu0 0
        %1726 = vmatprep.subr.bf16.mxu0 0
        %1727 = vmatpush1.bf16.msra.mxu0 %v1642
        %1728 = vmatprep.subr.bf16.mxu0 0
        %1729 = vmatpush1.bf16.msra.mxu0 %v1641
        %1730 = vmatprep.subr.bf16.mxu0 0
        %1731 = vmatpush2.bf16.msra.mxu0 0
        %1732 = vmatprep.subr.bf16.mxu0 0
        %1733 = vmatpush2.bf16.msra.mxu0 0
        %1734 = vmatprep.subr.bf16.mxu0 0
        %1735 = vmatpush2.bf16.msra.mxu0 0
        %1736 = vmatprep.subr.bf16.mxu0 0
        %1737 = vmatpush2.bf16.msra.mxu0 0
        %1738 = vmatprep.subr.bf16.mxu0 0
        %1739 = vmatpush2.bf16.msra.mxu0 0
        %1740 = vmatprep.subr.bf16.mxu0 0
        %1741 = vmatpush2.bf16.msra.mxu0 0
        %1742 = vmatprep.subr.bf16.mxu0 0
        %1743 = vmatpush2.bf16.msra.mxu0 0
        %1744 = vmatprep.subr.bf16.mxu0 0
        %1745 = vmatpush2.bf16.msra.mxu0 0
        %1746 = vmatprep.mubr.bf16.mxu0 0
        %1747 = vmatmul.mubr.bf16.gmra.mxu0 %v1712
        %v1748 = vpop.f32.mrf.mxu0
        %v1749 = vadd.f32 %v1632, %v1748
        %v1750 = vpop.f32.mrf.mxu0
        %v1751 = vpop.f32.mrf.mxu0
        %v1752 = vpop.f32.mrf.mxu0
        %1753 = vdwg.mxu0
        %v1754 = vmul.f32 %v1694, %v594
        %v1755 = vmul.f32 %v1697, %v595
        %v1756 = vmul.f32 %v1702, %v596
        %v1757 = vmul.f32 %v1705, %v597
        %v1758 = vmul.f32 %v1694, %v598
        %v1759 = vmul.f32 %v1697, %v599
        %v1760 = vmul.f32 %v1702, %v600
        %v1761 = vmul.f32 %v1705, %v601
        %v1762 = vmul.f32 %v1694, %v602
        %v1763 = vmul.f32 %v1697, %v603
        %v1764 = vmul.f32 %v1702, %v604
        %v1765 = vmul.f32 %v1705, %v605
        %v1766 = vmul.f32 %v1694, %v606
        %v1767 = vmul.f32 %v1697, %v607
        %v1768 = vmul.f32 %v1702, %v608
        %v1769 = vmul.f32 %v1705, %v609
        %v1770 = vpack.c.bf16 %v1755, %v1754
        %v1771 = vpack.c.bf16 %v1757, %v1756
        %v1772 = vpack.c.bf16 %v1759, %v1758
        %v1773 = vpack.c.bf16 %v1761, %v1760
        %v1774 = vpack.c.bf16 %v1763, %v1762
        %v1775 = vpack.c.bf16 %v1765, %v1764
        %v1776 = vpack.c.bf16 %v1767, %v1766
        %v1777 = vpack.c.bf16 %v1769, %v1768
        %v1778 = vmul.f32 %v1694, %v730
        %v1779 = vmul.f32 %v1697, %v732
        %v1780 = vmul.f32 %v1702, %v734
        %v1781 = vmul.f32 %v1705, %v736
        %v1782 = vmul.f32 %v1694, %v738
        %v1783 = vmul.f32 %v1697, %v740
        %v1784 = vmul.f32 %v1702, %v742
        %v1785 = vmul.f32 %v1705, %v744
        %v1786 = vmul.f32 %v1694, %v746
        %v1787 = vmul.f32 %v1697, %v748
        %v1788 = vmul.f32 %v1702, %v750
        %v1789 = vmul.f32 %v1705, %v752
        %v1790 = vmul.f32 %v1694, %v754
        %v1791 = vmul.f32 %v1697, %v756
        %v1792 = vmul.f32 %v1702, %v758
        %v1793 = vmul.f32 %v1705, %v760
        %v1794 = vpack.c.bf16 %v1779, %v1778
        %v1795 = vpack.c.bf16 %v1781, %v1780
        %v1796 = vpack.c.bf16 %v1783, %v1782
        %v1797 = vpack.c.bf16 %v1785, %v1784
        %v1798 = vpack.c.bf16 %v1787, %v1786
        %v1799 = vpack.c.bf16 %v1789, %v1788
        %v1800 = vpack.c.bf16 %v1791, %v1790
        %v1801 = vpack.c.bf16 %v1793, %v1792
        %1810 = vrot.lane.b32.xlu0 %v1794, 96
        %v1811 = vpop.permute.xlu0 %1810
        %1812 = vrot.lane.b32.xlu0 %v1795, 96
        %v1813 = vpop.permute.xlu0 %1812
        %1814 = vrot.lane.b32.xlu0 %v1796, 96
        %v1815 = vpop.permute.xlu0 %1814
        %1816 = vrot.lane.b32.xlu0 %v1797, 96
        %v1817 = vpop.permute.xlu0 %1816
        %1818 = vrot.lane.b32.xlu0 %v1798, 96
        %v1819 = vpop.permute.xlu0 %1818
        %1820 = vrot.lane.b32.xlu0 %v1799, 96
        %v1821 = vpop.permute.xlu0 %1820
        %1822 = vrot.lane.b32.xlu0 %v1800, 96
        %v1823 = vpop.permute.xlu0 %1822
        %1824 = vrot.lane.b32.xlu0 %v1801, 96
        %v1825 = vpop.permute.xlu0 %1824
        %v1827 = vsel %vm299, %v1811, %v906
        %v1830 = vsel %vm299, %v1813, %v908
        %v1833 = vsel %vm299, %v1815, %v910
        %v1836 = vsel %vm299, %v1817, %v912
        %v1839 = vsel %vm299, %v1819, %v914
        %v1842 = vsel %vm299, %v1821, %v916
        %v1845 = vsel %vm299, %v1823, %v918
        %v1848 = vsel %vm299, %v1825, %v920
        %v1850 = vpack.c.bf16 %v1749, %v1749
        %v1852 = vsel %vm299, %v1850, 0
        %v1855 = vsel %vm299, %v1770, 0
        %v1858 = vsel %vm299, %v1771, 0
        %v1861 = vsel %vm299, %v1772, 0
        %v1864 = vsel %vm299, %v1773, 0
        %v1867 = vsel %vm299, %v1774, 0
        %v1870 = vsel %vm299, %v1775, 0
        %v1873 = vsel %vm299, %v1776, 0
        %v1876 = vsel %vm299, %v1777, 0
        %1878 = vmatprep.subr.bf16.mxu0 0
        %1879 = vmatpush1.bf16.xpose.msra.mxu0 %v1876
        %1880 = vmatprep.subr.bf16.mxu0 0
        %1881 = vmatpush1.bf16.xpose.msra.mxu0 %v1873
        %1882 = vmatprep.subr.bf16.mxu0 0
        %1883 = vmatpush1.bf16.xpose.msra.mxu0 %v1870
        %1884 = vmatprep.subr.bf16.mxu0 0
        %1885 = vmatpush1.bf16.xpose.msra.mxu0 %v1867
        %1886 = vmatprep.subr.bf16.mxu0 0
        %1887 = vmatpush1.bf16.xpose.msra.mxu0 %v1864
        %1888 = vmatprep.subr.bf16.mxu0 0
        %1889 = vmatpush1.bf16.xpose.msra.mxu0 %v1861
        %1890 = vmatprep.subr.bf16.mxu0 0
        %1891 = vmatpush1.bf16.xpose.msra.mxu0 %v1858
        %1892 = vmatprep.subr.bf16.mxu0 0
        %1893 = vmatpush1.bf16.xpose.msra.mxu0 %v1855
        %1894 = vmatprep.subr.bf16.mxu0 0
        %1895 = vmatpush2.bf16.xpose.msra.mxu0 0
        %1896 = vmatprep.subr.bf16.mxu0 0
        %1897 = vmatpush2.bf16.xpose.msra.mxu0 0
        %1898 = vmatprep.subr.bf16.mxu0 0
        %1899 = vmatpush2.bf16.xpose.msra.mxu0 0
        %1900 = vmatprep.subr.bf16.mxu0 0
        %1901 = vmatpush2.bf16.xpose.msra.mxu0 0
        %1902 = vmatprep.subr.bf16.mxu0 0
        %1903 = vmatpush2.bf16.xpose.msra.mxu0 0
        %1904 = vmatprep.subr.bf16.mxu0 0
        %1905 = vmatpush2.bf16.xpose.msra.mxu0 0
        %1906 = vmatprep.subr.bf16.mxu0 0
        %1907 = vmatpush2.bf16.xpose.msra.mxu0 0
        %1908 = vmatprep.subr.bf16.mxu0 0
        %1909 = vmatpush2.bf16.xpose.msra.mxu0 0
        %1910 = vmatprep.mubr.bf16.mxu0 0
        %1911 = vmatmul.mubr.bf16.gmra.mxu0 %v1852
        %v1912 = vpop.f32.mrf.mxu0
        %v1913 = vadd.f32 %v622, %v1912
        %v1914 = vpop.f32.mrf.mxu0
        %v1915 = vpop.f32.mrf.mxu0
        %v1916 = vpop.f32.mrf.mxu0
        %1917 = vdwg.mxu0
        %vm1918 = vcmask 1043456
        %v1919 = vsel %vm1918, %v1913, -inf
        %1920 = vmax.xlane.f32.xlu0 %v1919
        %v1921 = vpop.xlane.xlu0 %1920
        %v1922 = vsub.f32 %v1913, %v1921
        %v1923 = vmul.f32 %v1922, 1.442695
        %v1924 = vpow.pop %v1923
        %v1925 = vpack.c.bf16 %v1924, %v1924
        %1926 = vmatprep.subr.bf16.mxu0 0
        %1927 = vmatpush1.bf16.msra.mxu0 %v1848
        %1928 = vmatprep.subr.bf16.mxu0 0
        %1929 = vmatpush1.bf16.msra.mxu0 %v1845
        %1930 = vmatprep.subr.bf16.mxu0 0
        %1931 = vmatpush1.bf16.msra.mxu0 %v1842
        %1932 = vmatprep.subr.bf16.mxu0 0
        %1933 = vmatpush1.bf16.msra.mxu0 %v1839
        %1934 = vmatprep.subr.bf16.mxu0 0
        %1935 = vmatpush1.bf16.msra.mxu0 %v1836
        %1936 = vmatprep.subr.bf16.mxu0 0
        %1937 = vmatpush1.bf16.msra.mxu0 %v1833
        %1938 = vmatprep.subr.bf16.mxu0 0
        %1939 = vmatpush1.bf16.msra.mxu0 %v1830
        %1940 = vmatprep.subr.bf16.mxu0 0
        %1941 = vmatpush1.bf16.msra.mxu0 %v1827
        %1942 = vmatprep.subr.bf16.mxu0 0
        %1943 = vmatpush2.bf16.msra.mxu0 0
        %1944 = vmatprep.subr.bf16.mxu0 0
        %1945 = vmatpush2.bf16.msra.mxu0 0
        %1946 = vmatprep.subr.bf16.mxu0 0
        %1947 = vmatpush2.bf16.msra.mxu0 0
        %1948 = vmatprep.subr.bf16.mxu0 0
        %1949 = vmatpush2.bf16.msra.mxu0 0
        %1950 = vmatprep.subr.bf16.mxu0 0
        %1951 = vmatpush2.bf16.msra.mxu0 0
        %1952 = vmatprep.subr.bf16.mxu0 0
        %1953 = vmatpush2.bf16.msra.mxu0 0
        %1954 = vmatprep.subr.bf16.mxu0 0
        %1955 = vmatpush2.bf16.msra.mxu0 0
        %1956 = vmatprep.subr.bf16.mxu0 0
        %1957 = vmatpush2.bf16.msra.mxu0 0
        %1958 = vmatprep.mubr.bf16.mxu0 0
        %1959 = vmatmul.mubr.bf16.gmra.mxu0 %v1925
        %v1960 = vpop.f32.mrf.mxu0
        %v1961 = vadd.f32 0.0, %v1960
        %v1962 = vpop.f32.mrf.mxu0
        %v1963 = vpop.f32.mrf.mxu0
        %v1964 = vpop.f32.mrf.mxu0
        %1965 = vdwg.mxu0
        %v1966 = vrcp.pop %v1961
        %1968 = vrot.lane.b32.xlu0 %v1966, 96
        %v1969 = vpop.permute.xlu0 %1968
        %v1971 = vmul.f32 %v1961, %v1969
        %v1972 = vpack.c.bf16 %v1971, %v1971
        %v1973 = vlaneseq
        %v1974 = vshrl.u32 %v1973, 7
        %v1975 = vsub.s32 0, %v1974
        %v1976 = vrot.slane %v1547, %v1975
        %1977 = vrot.lane.b32.xlu0 %v1641, 32
        %v1978 = vpop.permute.xlu0 %1977
        %1979 = vrot.lane.b32.xlu0 %v1642, 32
        %v1980 = vpop.permute.xlu0 %1979
        %v1984 = vsel %vm299, %v1972, 0
        %1986 = vmatprep.subr.bf16.mxu0 0
        %1987 = vmatpush1.bf16.msra.mxu0 0
        %1988 = vmatprep.subr.bf16.mxu0 0
        %1989 = vmatpush1.bf16.msra.mxu0 0
        %1990 = vmatprep.subr.bf16.mxu0 0
        %1991 = vmatpush1.bf16.msra.mxu0 0
        %1992 = vmatprep.subr.bf16.mxu0 0
        %1993 = vmatpush1.bf16.msra.mxu0 0
        %1994 = vmatprep.subr.bf16.mxu0 0
        %1995 = vmatpush1.bf16.msra.mxu0 0
        %1996 = vmatprep.subr.bf16.mxu0 0
        %1997 = vmatpush1.bf16.msra.mxu0 0
        %1998 = vmatprep.subr.bf16.mxu0 0
        %1999 = vmatpush1.bf16.msra.mxu0 %v1980
        %2000 = vmatprep.subr.bf16.mxu0 0
        %2001 = vmatpush1.bf16.msra.mxu0 %v1978
        %2002 = vmatprep.subr.bf16.mxu0 0
        %2003 = vmatpush2.bf16.msra.mxu0 0
        %2004 = vmatprep.subr.bf16.mxu0 0
        %2005 = vmatpush2.bf16.msra.mxu0 0
        %2006 = vmatprep.subr.bf16.mxu0 0
        %2007 = vmatpush2.bf16.msra.mxu0 0
        %2008 = vmatprep.subr.bf16.mxu0 0
        %2009 = vmatpush2.bf16.msra.mxu0 0
        %2010 = vmatprep.subr.bf16.mxu0 0
        %2011 = vmatpush2.bf16.msra.mxu0 0
        %2012 = vmatprep.subr.bf16.mxu0 0
        %2013 = vmatpush2.bf16.msra.mxu0 0
        %2014 = vmatprep.subr.bf16.mxu0 0
        %2015 = vmatpush2.bf16.msra.mxu0 0
        %2016 = vmatprep.subr.bf16.mxu0 0
        %2017 = vmatpush2.bf16.msra.mxu0 0
        %2018 = vmatprep.mubr.bf16.mxu0 0
        %2019 = vmatmul.mubr.bf16.gmra.mxu0 %v1984
        %v2020 = vpop.f32.mrf.mxu0
        %v2021 = vadd.f32 %v1976, %v2020
        %v2022 = vpop.f32.mrf.mxu0
        %v2023 = vpop.f32.mrf.mxu0
        %v2024 = vpop.f32.mrf.mxu0
        %2025 = vdwg.mxu0
        %v2026 = vadd.f32 %v1624, %v2021
        %vm2027 = vcmask 257024
        %v2028 = vsel %vm2027, %v2026, 0.0
        %2029 = vadd.xlane.f32.xlu0 %v2028
        %v2030 = vpop.xlane.xlu0 %2029
        %v2031 = vmul.f32 %v2030, %v1236
        %v2032 = vsub.f32 %v2026, %v2031
        %v2033 = vmul.f32 %v2032, %v2032
        %v2034 = vsel %vm2027, %v2033, 0.0
        %2035 = vadd.xlane.f32.xlu0 %v2034
        %v2036 = vpop.xlane.xlu0 %2035
        %v2037 = vmul.f32 %v2036, %v1236
        %v2038 = vadd.f32 %v2037, 1e-05
        %v2039 = vrsqrt.pop %v2038
        %v2040 = vmul.f32 %v2032, %v2039
        %v2041 = vlaneseq
        %v2042 = vshrl.u32 %v2041, 7
        %v2043 = vsub.s32 0, %v2042
        %v2044 = vrot.slane %v1550, %v2043
        %v2045 = vmul.f32 %v2040, %v2044
        %v2046 = vlaneseq
        %v2047 = vshrl.u32 %v2046, 7
        %v2048 = vsub.s32 0, %v2047
        %v2049 = vrot.slane %v1551, %v2048
        %v2050 = vadd.f32 %v2045, %v2049
        %v2051 = vpack.c.bf16 %v2050, %v2050
        %v2052 = vlaneseq
        %v2053 = vshrl.u32 %v2052, 7
        %v2054 = vsub.s32 0, %v2053
        %v2055 = vrot.slane %v1548, %v2054
        %v2056 = vunpack.c.h.b16 %v1538
        %v2057 = vunpack.c.h.b16 %v1540
        %v2058 = vunpack.c.h.b16 %v1542
        %v2059 = vunpack.c.h.b16 %v1544
        %v2060 = vpack.c.b16 %v2057, %v2056
        %v2061 = vpack.c.b16 %v2059, %v2058
        %v2065 = vsel %vm299, %v2051, 0
        %2067 = vmatprep.subr.bf16.mxu0 0
        %2068 = vmatpush1.bf16.msra.mxu0 0
        %2069 = vmatprep.subr.bf16.mxu0 0
        %2070 = vmatpush1.bf16.msra.mxu0 0
        %2071 = vmatprep.subr.bf16.mxu0 0
        %2072 = vmatpush1.bf16.msra.mxu0 0
        %2073 = vmatprep.subr.bf16.mxu0 0
        %2074 = vmatpush1.bf16.msra.mxu0 0
        %2075 = vmatprep.subr.bf16.mxu0 0
        %2076 = vmatpush1.bf16.msra.mxu0 0
        %2077 = vmatprep.subr.bf16.mxu0 0
        %2078 = vmatpush1.bf16.msra.mxu0 0
        %2079 = vmatprep.subr.bf16.mxu0 0
        %2080 = vmatpush1.bf16.msra.mxu0 %v2061
        %2081 = vmatprep.subr.bf16.mxu0 0
        %2082 = vmatpush1.bf16.msra.mxu0 %v2060
        %2083 = vmatprep.subr.bf16.mxu0 0
        %2084 = vmatpush2.bf16.msra.mxu0 0
        %2085 = vmatprep.subr.bf16.mxu0 0
        %2086 = vmatpush2.bf16.msra.mxu0 0
        %2087 = vmatprep.subr.bf16.mxu0 0
        %2088 = vmatpush2.bf16.msra.mxu0 0
        %2089 = vmatprep.subr.bf16.mxu0 0
        %2090 = vmatpush2.bf16.msra.mxu0 0
        %2091 = vmatprep.subr.bf16.mxu0 0
        %2092 = vmatpush2.bf16.msra.mxu0 0
        %2093 = vmatprep.subr.bf16.mxu0 0
        %2094 = vmatpush2.bf16.msra.mxu0 0
        %2095 = vmatprep.subr.bf16.mxu0 0
        %2096 = vmatpush2.bf16.msra.mxu0 0
        %2097 = vmatprep.subr.bf16.mxu0 0
        %2098 = vmatpush2.bf16.msra.mxu0 0
        %2099 = vmatprep.mubr.bf16.mxu0 0
        %2100 = vmatmul.mubr.bf16.gmra.mxu0 %v2065
        %v2101 = vpop.f32.mrf.mxu0
        %v2102 = vadd.f32 %v2055, %v2101
        %v2103 = vpop.f32.mrf.mxu0
        %v2104 = vpop.f32.mrf.mxu0
        %v2105 = vpop.f32.mrf.mxu0
        %2106 = vdwg.mxu0
        %v2107 = vmul.f32 %v2102, 0.5
        %v2108 = vmul.f32 %v2102, %v2102
        %v2109 = vmul.f32 %v2108, %v2102
        %v2110 = vmul.f32 %v2109, 0.044715
        %v2111 = vadd.f32 %v2102, %v2110
        %v2112 = vmul.f32 %v2111, 0.7978846
        %v2113 = vtanh.pop %v2112
        %v2114 = vadd.f32 %v2113, 1.0
        %v2115 = vmul.f32 %v2107, %v2114
        %v2116 = vpack.c.bf16 %v2115, %v2115
        %v2117 = vlaneseq
        %v2118 = vshrl.u32 %v2117, 7
        %v2119 = vsub.s32 0, %v2118
        %v2120 = vrot.slane %v1549, %v2119
        %v2125 = vunpack.c.l.b16 %v1539
        %v2126 = vunpack.c.l.b16 %v1541
        %v2127 = vunpack.c.l.b16 %v1543
        %v2128 = vunpack.c.l.b16 %v1545
        %v2129 = vpack.c.b16 %v2126, %v2125
        %v2130 = vpack.c.b16 %v2128, %v2127
        %2133 = vmatprep.subr.bf16.mxu0 0
        %2134 = vmatpush1.bf16.xpose.msra.mxu0 0
        %2135 = vmatprep.subr.bf16.mxu0 0
        %2136 = vmatpush1.bf16.xpose.msra.mxu0 0
        %2137 = vmatprep.subr.bf16.mxu0 0
        %2138 = vmatpush1.bf16.xpose.msra.mxu0 0
        %2139 = vmatprep.subr.bf16.mxu0 0
        %2140 = vmatpush1.bf16.xpose.msra.mxu0 0
        %2141 = vmatprep.subr.bf16.mxu0 0
        %2142 = vmatpush1.bf16.xpose.msra.mxu0 0
        %2143 = vmatprep.subr.bf16.mxu0 0
        %2144 = vmatpush1.bf16.xpose.msra.mxu0 0
        %2145 = vmatprep.subr.bf16.mxu0 0
        %2146 = vmatpush1.bf16.xpose.msra.mxu0 %v2130
        %2147 = vmatprep.subr.bf16.mxu0 0
        %2148 = vmatpush1.bf16.xpose.msra.mxu0 %v2129
        %2149 = vmatprep.subr.bf16.mxu0 0
        %2150 = vmatpush2.bf16.xpose.msra.mxu0 0
        %2151 = vmatprep.subr.bf16.mxu0 0
        %2152 = vmatpush2.bf16.xpose.msra.mxu0 0
        %2153 = vmatprep.subr.bf16.mxu0 0
        %2154 = vmatpush2.bf16.xpose.msra.mxu0 0
        %2155 = vmatprep.subr.bf16.mxu0 0
        %2156 = vmatpush2.bf16.xpose.msra.mxu0 0
        %2157 = vmatprep.subr.bf16.mxu0 0
        %2158 = vmatpush2.bf16.xpose.msra.mxu0 0
        %2159 = vmatprep.subr.bf16.mxu0 0
        %2160 = vmatpush2.bf16.xpose.msra.mxu0 0
        %2161 = vmatprep.subr.bf16.mxu0 0
        %2162 = vmatpush2.bf16.xpose.msra.mxu0 0
        %2163 = vmatprep.subr.bf16.mxu0 0
        %2164 = vmatpush2.bf16.xpose.msra.mxu0 0
        %2165 = vmatprep.mubr.bf16.mxu0 0
        %2166 = vmatmul.mubr.bf16.gmra.mxu0 %v2116
        %v2167 = vpop.f32.mrf.mxu0
        %v2168 = vadd.f32 %v2120, %v2167
        %v2169 = vpop.f32.mrf.mxu0
        %v2170 = vpop.f32.mrf.mxu0
        %v2171 = vpop.f32.mrf.mxu0
        %2172 = vdwg.mxu0
        %v2173 = vadd.f32 %v2050, %v2168
        %v2174 = vsel %vm2027, %v2173, 0.0
        %2175 = vadd.xlane.f32.xlu0 %v2174
        %v2176 = vpop.xlane.xlu0 %2175
        %v2177 = vmul.f32 %v2176, %v1236
        %v2178 = vsub.f32 %v2173, %v2177
        %v2179 = vmul.f32 %v2178, %v2178
        %v2180 = vsel %vm2027, %v2179, 0.0
        %2181 = vadd.xlane.f32.xlu0 %v2180
        %v2182 = vpop.xlane.xlu0 %2181
        %v2183 = vmul.f32 %v2182, %v1236
        %v2184 = vadd.f32 %v2183, 1e-05
        %v2185 = vrsqrt.pop %v2184
        %v2186 = vmul.f32 %v2178, %v2185
        %v2187 = vlaneseq
        %v2188 = vshrl.u32 %v2187, 7
        %v2189 = vsub.s32 0, %v2188
        %v2190 = vrot.slane %v1552, %v2189
        %v2191 = vmul.f32 %v2186, %v2190
        %v2192 = vlaneseq
        %v2193 = vshrl.u32 %v2192, 7
        %v2194 = vsub.s32 0, %v2193
        %v2195 = vrot.slane %v1553, %v2194
        %v2196 = vadd.f32 %v2191, %v2195
        %v2197 = vpack.c.bf16 %v2196, %v2196
        %v2198 = vlaneseq
        %v2199 = vshrl.u32 %v2198, 7
        %v2200 = vsub.s32 0, %v2199
        %v2201 = vrot.slane %v268, %v2200
        %v2202 = vunpack.c.h.b16 %v261
        %v2203 = vunpack.c.h.b16 %v262
        %v2204 = vunpack.c.h.b16 %v263
        %v2205 = vunpack.c.h.b16 %v264
        %v2206 = vpack.c.b16 %v2203, %v2202
        %v2207 = vpack.c.b16 %v2205, %v2204
        %v2211 = vsel %vm299, %v2197, 0
        %2213 = vmatprep.subr.bf16.mxu0 0
        %2214 = vmatpush1.bf16.msra.mxu0 0
        %2215 = vmatprep.subr.bf16.mxu0 0
        %2216 = vmatpush1.bf16.msra.mxu0 0
        %2217 = vmatprep.subr.bf16.mxu0 0
        %2218 = vmatpush1.bf16.msra.mxu0 0
        %2219 = vmatprep.subr.bf16.mxu0 0
        %2220 = vmatpush1.bf16.msra.mxu0 0
        %2221 = vmatprep.subr.bf16.mxu0 0
        %2222 = vmatpush1.bf16.msra.mxu0 0
        %2223 = vmatprep.subr.bf16.mxu0 0
        %2224 = vmatpush1.bf16.msra.mxu0 0
        %2225 = vmatprep.subr.bf16.mxu0 0
        %2226 = vmatpush1.bf16.msra.mxu0 %v2207
        %2227 = vmatprep.subr.bf16.mxu0 0
        %2228 = vmatpush1.bf16.msra.mxu0 %v2206
        %2229 = vmatprep.subr.bf16.mxu0 0
        %2230 = vmatpush2.bf16.msra.mxu0 0
        %2231 = vmatprep.subr.bf16.mxu0 0
        %2232 = vmatpush2.bf16.msra.mxu0 0
        %2233 = vmatprep.subr.bf16.mxu0 0
        %2234 = vmatpush2.bf16.msra.mxu0 0
        %2235 = vmatprep.subr.bf16.mxu0 0
        %2236 = vmatpush2.bf16.msra.mxu0 0
        %2237 = vmatprep.subr.bf16.mxu0 0
        %2238 = vmatpush2.bf16.msra.mxu0 0
        %2239 = vmatprep.subr.bf16.mxu0 0
        %2240 = vmatpush2.bf16.msra.mxu0 0
        %2241 = vmatprep.subr.bf16.mxu0 0
        %2242 = vmatpush2.bf16.msra.mxu0 0
        %2243 = vmatprep.subr.bf16.mxu0 0
        %2244 = vmatpush2.bf16.msra.mxu0 0
        %2245 = vmatprep.mubr.bf16.mxu0 0
        %2246 = vmatmul.mubr.bf16.gmra.mxu0 %v2211
        %v2247 = vpop.f32.mrf.mxu0
        %v2248 = vadd.f32 %v2201, %v2247
        %v2249 = vpop.f32.mrf.mxu0
        %v2250 = vpop.f32.mrf.mxu0
        %v2251 = vpop.f32.mrf.mxu0
        %2252 = vdwg.mxu0
        %2253 = vst [vmem:[%s259] sm:$0xf] %v2248
        %s2254 = sand.u32 %s120, 1
        %s2255 = scalar_lea.sflag [#allocation4], %s2254
        %s2256 = sand.u32 %s120, 1
        %s2257 = smul.addr %s2256, 4
        %s2258 = scalar_lea.vmem [#allocation10], %s2257
        // Predicated region
        $region53: #{tpu_custom_call.1} parent=35 // pred_check
          %p2259 = pneg %p130
        $region54: #{tpu_custom_call.1} parent=35 // pred_check_branch
          %2261 = sbr.rel (%p2259) target = $region56
        $region55: #{tpu_custom_call.1} parent=35 // pred_region
          %s2263 = ssub.s32 64, 64
          %2264 = vsyncadd %s2255, %s2263
          %s2265 = smul.addr %s23, 64
          %s2266 = scalar_lea.hbm %s4, %s2265
          %s2268 = sshll.u32 %s2258, 4
          %s2269 = int_to_ptr.vmem [resolvable:$true] %s2268
          %2271 = dma.vmem_to_hbm [thread:$0]  %s2269, 64, %s2266, %s2255
        $region56: #{tpu_custom_call.1} parent=35 // pred_fallthru
          _
      $region36: #{tpu_custom_call.1} parent=5 // pred_fallthru
        _
      %p2272 = scmp.le.s32.totalorder 2, %s18
      // Predicated region
      $region57: #{tpu_custom_call.1} parent=5 // pred_check
        %p2273 = pneg %p2272
      $region58: #{tpu_custom_call.1} parent=5 // pred_check_branch
        %2275 = sbr.rel (%p2273) target = $region60
      $region59: #{tpu_custom_call.1} parent=5 // pred_region
        %s2276 = ssub.s32 %s18, 2
        // Predicated region
        $region61: #{tpu_custom_call.1} parent=59 // pred_check
          %p2277 = pneg %p136
        $region62: #{tpu_custom_call.1} parent=59 // pred_check_branch
          %2279 = sbr.rel (%p2277) target = $region64
        $region63: #{tpu_custom_call.1} parent=59 // pred_region
          %s2280 = sand.u32 %s121, 1
          %s2281 = scalar_lea.sflag [#allocation4], %s2280
          %s2282 = sand.u32 %s121, 1
          %s2283 = smul.addr %s2282, 4
          %s2284 = scalar_lea.vmem [#allocation10], %s2283
          %2285 = dma.done %s2281, 64
        $region64: #{tpu_custom_call.1} parent=59 // pred_fallthru
          _
      $region60: #{tpu_custom_call.1} parent=5 // pred_fallthru
        _
    $region6: #{tpu_custom_call.1} parent=1 // loop_footer
      %s22 = sadd.s32 1, %s18
    $region7: #{tpu_custom_call.1} parent=1 // loop_footer_branch
      %17 = sbr.rel target = $region3
    $region8: #{tpu_custom_call.1} parent=1 // loop_exit
      _
    %2286 = vsyncpa [#allocation3], 1
    %s2287 = scalar_lea.sflag [#allocation3], 1
    %2288 = vsyncpa %s2287, 1
    %2289 = vsyncpa [#allocation6], 1
    %2290 = vsyncpa [#allocation9], 1
    %2291 = vsyncpa [#allocation4], 1
    %s2292 = scalar_lea.sflag [#allocation4], 1
    %2293 = vsyncpa %s2292, 1

</llo_original>
